<compile_context>
chip_gen: v7x
topology: tpu7x:2x2x1
jax: 0.10.0
libtpu: 0.0.40
codegen_flags: <defaults>
</compile_context>

<pallas_src>
import functools

import numpy as np
import jax
import jax.numpy as jnp
from jax.experimental import pallas as pl
from jax.experimental.pallas import tpu as pltpu

HIDDEN = 150                 # Score() default hidden_dim (zero-padded to a lane multiple)
LANE = 128
_VMEM_LIMIT = 40 * 1024 * 1024


def _round_up(x, m):
    return ((x + m - 1) // m) * m


# ----------------------------------------------------------------------------
# Parameter preparation: pad hidden dim 150 -> 256 with zeros (exact: padded
# hidden units are ReLU(0)=0 and their outgoing weights are 0), pre-cast the
# big matmul weights to bf16, keep biases / the final-layer row vector in f32
# (they are used on the VPU), and reshape b3 to a (1,1) SMEM scalar.
# ----------------------------------------------------------------------------
def prepare_score_params(raw):
    w1, b1, w2, b2, w3, b3 = raw
    d, h = w1.shape
    hp = _round_up(h, LANE)
    w1p = jnp.zeros((d, hp), jnp.float32).at[:, :h].set(w1).astype(jnp.bfloat16)
    b1p = jnp.zeros((1, hp), jnp.float32).at[:, :h].set(b1)
    w2p = jnp.zeros((hp, hp), jnp.float32).at[:h, :h].set(w2).astype(jnp.bfloat16)
    b2p = jnp.zeros((1, hp), jnp.float32).at[:, :h].set(b2)
    w3r = jnp.zeros((1, hp), jnp.float32).at[:, :h].set(w3.reshape(1, h))
    b3p = jnp.asarray(b3, jnp.float32).reshape(1, 1)
    return w1p, b1p, w2p, b2p, w3r, b3p


# ----------------------------------------------------------------------------
# Fused kernel.  Grid (B, S/ts).
#   j == 0  : per-document attention MLP (T-chunked), attn-weighted emb cached in
#             VMEM scratch for all span tiles of the doc.
#             NOTE: this scratch caching is only valid because the span axis (j)
#             iterates sequentially ('arbitrary'); never mark it 'parallel'.
#   every j : T-chunked, skip-guarded one-hot gather (start/end rows) and in-span
#             attention-weighted sum into f32 accumulators; then the scoring MLP
#             runs on the in-register [ts, 3E] tile (no HBM round trip).
# ----------------------------------------------------------------------------
def _mention_score_kernel(bounds_ref,                                   # SMEM prefetch
                          emb_ref,                                      # [Tp, E] bf16
                          wa1_ref, ba1_ref, wa2_ref, ba2_ref, wa3r_ref, ba3_ref,
                          ws1_ref, bs1_ref, ws2_ref, bs2_ref, ws3r_ref, bs3_ref,
                          meta_ref,                                     # [ts, 3] int32
                          oemb_ref, oscore_ref,                         # [ts,3E], [1,ts]
                          wsum_ref, accg_ref, accw_ref,                 # scratch
                          *, t_chunk):
    b = pl.program_id(0)
    j = pl.program_id(1)
    nj = pl.num_programs(1)
    tp, e = wsum_ref.shape
    ts = accw_ref.shape[0]
    n_chunks = tp // t_chunk

    # ---- per-document attention MLP, run once per doc, chunked over T ----
    @pl.when(j == 0)
    def _():
        @pl.loop(0, n_chunks)
        def _(c):
            c0 = pl.multiple_of(c * t_chunk, t_chunk)
            xb = emb_ref[pl.ds(c0, t_chunk), :]                          # [Tc, E] bf16
            h = jnp.maximum(
                jnp.dot(xb, wa1_ref[...], preferred_element_type=jnp.float32)
                + ba1_ref[...], 0.0)
            h = jnp.maximum(
                jnp.dot(h.astype(jnp.bfloat16), wa2_ref[...],
                        preferred_element_type=jnp.float32) + ba2_ref[...], 0.0)
            attn = jnp.sum(h * wa3r_ref[...], axis=-1, keepdims=True) + ba3_ref[0, 0]
            wsum_ref[pl.ds(c0, t_chunk), :] = (
                xb.astype(jnp.float32) * attn).astype(jnp.bfloat16)

    # ---- span metadata for this tile (single packed VMEM block) ----
    meta = meta_ref[...]                                                 # [ts, 3] int32
    starts = meta[:, 0:1]
    ends = meta[:, 1:2]
    valid = meta[:, 2:3].astype(jnp.float32)
    se = jnp.concatenate([starts, ends], axis=0)                         # [2ts, 1]

    # token range covered by any valid span of this tile (scalar-prefetched, SMEM)
    lo = bounds_ref[(b * nj + j) * 2]
    hi = bounds_ref[(b * nj + j) * 2 + 1]

    accg_ref[...] = jnp.zeros_like(accg_ref)
    accw_ref[...] = jnp.zeros_like(accw_ref)

    # ---- T-chunked gather + in-span weighted sum; skip non-overlapping chunks ----
    @pl.loop(0, n_chunks)
    def _(c):
        c0 = pl.multiple_of(c * t_chunk, t_chunk)

        @pl.when(jnp.logical_and(c0 <= hi, c0 + t_chunk > lo))
        def _():
            # One iota per chunk; equality selector and in-span mask derived from it.
            tok2 = jax.lax.broadcasted_iota(jnp.int32, (2 * ts, t_chunk), 1) + c0
            sel = (tok2 == se).astype(jnp.bfloat16)                      # [2ts, Tc]
            tok = tok2[:ts, :]
            in_span = jnp.logical_and(tok >= starts,
                                      tok <= ends).astype(jnp.bfloat16)  # [ts, Tc]
            emb_c = emb_ref[pl.ds(c0, t_chunk), :]                       # [Tc, E] bf16
            accg_ref[...] += jnp.dot(sel, emb_c,
                                     preferred_element_type=jnp.float32)
            accw_ref[...] += jnp.dot(in_span, wsum_ref[pl.ds(c0, t_chunk), :],
                                     preferred_element_type=jnp.float32)

    # ---- write the three span-embedding slabs; valid==0 zeroes padded spans ----
    g_start = accg_ref[:ts, :] * valid
    g_end = accg_ref[ts:, :] * valid
    g_attn = accw_ref[...] * valid
    oemb_ref[:, :e] = g_start
    oemb_ref[:, e:2 * e] = g_end
    oemb_ref[:, 2 * e:] = g_attn

    # ---- fused scoring MLP on the in-register [ts, 3E] tile ----
    h = (jnp.dot(g_start.astype(jnp.bfloat16), ws1_ref[:e, :],
                 preferred_element_type=jnp.float32)
         + jnp.dot(g_end.astype(jnp.bfloat16), ws1_ref[e:2 * e, :],
                   preferred_element_type=jnp.float32)
         + jnp.dot(g_attn.astype(jnp.bfloat16), ws1_ref[2 * e:, :],
                   preferred_element_type=jnp.float32))
    h = jnp.maximum(h + bs1_ref[...], 0.0)
    h = jnp.maximum(
        jnp.dot(h.astype(jnp.bfloat16), ws2_ref[...],
                preferred_element_type=jnp.float32) + bs2_ref[...], 0.0)
    # Final Linear(Hp, 1): VPU broadcast-multiply + lane reduction, SMEM bias.
    score = jnp.sum(h * ws3r_ref[...], axis=-1) + bs3_ref[0, 0]          # [ts]
    oscore_ref[...] = score[None, :]                                     # [1, ts] lane-dense


# ----------------------------------------------------------------------------
# MentionScore forward (single pallas_call).
# span_tile=256 targets v6e/v7x (256-tall MXU); use span_tile=128 on v5e.
# ----------------------------------------------------------------------------
def mention_score_forward(batch_embeds, starts, ends, valid, params,
                          span_tile=256, t_chunk=512):
    b, t, e = batch_embeds.shape
    s = starts.shape[1]

    wa1, ba1, wa2, ba2, wa3r, ba3 = prepare_score_params(params["attention"])
    ws1, bs1, ws2, bs2, ws3r, bs3 = prepare_score_params(params["score"])
    hp = wa1.shape[1]

    # ---- pad token axis to a multiple of the T-chunk, cast emb to bf16 once ----
    tc = min(t_chunk, _round_up(t, 8))
    tp = _round_up(t, tc)
    emb = batch_embeds.astype(jnp.bfloat16)
    if tp != t:
        emb = jnp.pad(emb, ((0, 0), (0, tp - t), (0, 0)))

    # ---- pad span axis ONCE; slice only at the very end ----
    ts = min(span_tile, _round_up(s, 8))
    sp = _round_up(s, ts)
    n_tiles = sp // ts
    st = starts.reshape(b, s).astype(jnp.int32)
    en = ends.reshape(b, s).astype(jnp.int32)
    va = valid.reshape(b, s)
    if sp != s:
        st = jnp.pad(st, ((0, 0), (0, sp - s)))
        en = jnp.pad(en, ((0, 0), (0, sp - s)))
        va = jnp.pad(va, ((0, 0), (0, sp - s)))
    meta = jnp.stack([st, en, va.astype(jnp.int32)], axis=-1)            # [B, sp, 3]

    # ---- per-(doc, span-tile) token bounds for chunk skipping (scalar prefetch) ----
    va_t = va.reshape(b, n_tiles, ts) > 0
    lo = jnp.min(jnp.where(va_t, st.reshape(b, n_tiles, ts), tp), axis=-1)
    hi = jnp.max(jnp.where(va_t, en.reshape(b, n_tiles, ts), -1), axis=-1)
    bounds = jnp.stack([lo, hi], axis=-1).reshape(-1).astype(jnp.int32)  # [B*n_tiles*2]

    kernel = functools.partial(_mention_score_kernel, t_chunk=tc)

    grid_spec = pltpu.PrefetchScalarGridSpec(
        num_scalar_prefetch=1,
        grid=(b, n_tiles),
        in_specs=[
            pl.BlockSpec((None, tp, e), lambda i, j, bd: (i, 0, 0)),     # emb (doc-resident)
            pl.BlockSpec((e, hp), lambda i, j, bd: (0, 0)),              # attention MLP
            pl.BlockSpec((1, hp), lambda i, j, bd: (0, 0)),
            pl.BlockSpec((hp, hp), lambda i, j, bd: (0, 0)),
            pl.BlockSpec((1, hp), lambda i, j, bd: (0, 0)),
            pl.BlockSpec((1, hp), lambda i, j, bd: (0, 0)),
            pl.BlockSpec(memory_space=pltpu.MemorySpace.SMEM),           # ba3 scalar
            pl.BlockSpec((3 * e, hp), lambda i, j, bd: (0, 0)),          # scoring MLP
            pl.BlockSpec((1, hp), lambda i, j, bd: (0, 0)),
            pl.BlockSpec((hp, hp), lambda i, j, bd: (0, 0)),
            pl.BlockSpec((1, hp), lambda i, j, bd: (0, 0)),
            pl.BlockSpec((1, hp), lambda i, j, bd: (0, 0)),
            pl.BlockSpec(memory_space=pltpu.MemorySpace.SMEM),           # bs3 scalar
            pl.BlockSpec((None, ts, 3), lambda i, j, bd: (i, j, 0)),     # packed span meta
        ],
        out_specs=[
            pl.BlockSpec((None, ts, 3 * e), lambda i, j, bd: (i, j, 0)), # span embeds
            pl.BlockSpec((None, 1, ts), lambda i, j, bd: (i, 0, j)),     # scores (lane-dense)
        ],
        scratch_shapes=[
            pltpu.VMEM((tp, e), jnp.bfloat16),        # attn-weighted emb (per doc)
            pltpu.VMEM((2 * ts, e), jnp.float32),     # start/end gather accumulator
            pltpu.VMEM((ts, e), jnp.float32),         # in-span weighted-sum accumulator
        ],
    )

    span_embeds_p, scores_p = pl.pallas_call(
        kernel,
        out_shape=(jax.ShapeDtypeStruct((b, sp, 3 * e), jnp.float32),
                   jax.ShapeDtypeStruct((b, 1, sp), jnp.float32)),
        grid_spec=grid_spec,
        compiler_params=pltpu.CompilerParams(
            dimension_semantics=("parallel", "arbitrary"),
            vmem_limit_bytes=_VMEM_LIMIT),
    )(bounds, emb,
      wa1, ba1, wa2, ba2, wa3r, ba3,
      ws1, bs1, ws2, bs2, ws3r, bs3,
      meta)

    span_embeds = span_embeds_p[:, :s, :]
    scores = scores_p.reshape(b, sp)[:, :s].reshape(b, s, 1)
    return span_embeds, scores


# ----------------------------------------------------------------------------
# Deterministic parameter init (PyTorch nn.Linear style uniform(-1/sqrt(fan_in)))
# Weights stored as [in, out] so kernels compute x @ W + b.
# ----------------------------------------------------------------------------
def init_linear(key, fan_in, fan_out):
    kw, kb = jax.random.split(key)
    bound = 1.0 / np.sqrt(fan_in)
    w = jax.random.uniform(kw, (fan_in, fan_out), jnp.float32, -bound, bound)
    b = jax.random.uniform(kb, (1, fan_out), jnp.float32, -bound, bound)
    return w, b


def init_score_params(key, in_dim, hidden=HIDDEN):
    k1, k2, k3 = jax.random.split(key, 3)
    w1, b1 = init_linear(k1, in_dim, hidden)
    w2, b2 = init_linear(k2, hidden, hidden)
    w3, b3 = init_linear(k3, hidden, 1)
    return (w1, b1, w2, b2, w3, b3)


# ----------------------------------------------------------------------------
# Ground-truth reference in numpy float64 (mirrors PyTorch code, dropout in eval
# mode).  The kernel runs bf16 MXU matmuls, so compare with a bf16-class tolerance.
# ----------------------------------------------------------------------------
def ref_forward(batch_embeds, batch_spans, max_spans, params):
    emb = np.asarray(batch_embeds, np.float64)

    def mlp(x, p):
        w1, b1, w2, b2, w3, b3 = [np.asarray(a, np.float64) for a in p]
        h = np.maximum(x @ w1 + b1, 0.0)
        h = np.maximum(h @ w2 + b2, 0.0)
        return h @ w3 + b3

    B, T, E = emb.shape
    gi = 3 * E
    attn = mlp(emb.reshape(B * T, E), params["attention"]).reshape(B, T, 1)
    span_embeds = np.zeros((B, max_spans, gi), np.float64)
    for d, spans in enumerate(batch_spans):
        for i, (st, en) in enumerate(spans):
            w = np.sum(emb[d, st:en + 1, :] * attn[d, st:en + 1, :], axis=0)
            span_embeds[d, i] = np.concatenate([emb[d, st], emb[d, en], w])
    scores = mlp(span_embeds.reshape(B * max_spans, gi), params["score"]).reshape(
        B, max_spans, 1)
    return span_embeds, scores


if __name__ == "__main__":
    B, T, E = 2, 16, 128
    attn_dim = E
    gi_dim = 3 * E

    key = jax.random.PRNGKey(0)
    k_emb, k_attn, k_score = jax.random.split(key, 3)

    batch_embeds = jax.random.normal(k_emb, (B, T, E), dtype=jnp.float32)

    params = {
        "attention": init_score_params(k_attn, attn_dim),
        "score": init_score_params(k_score, gi_dim),
    }

    # Deterministic "TokenRange" spans (start, end inclusive) per document.
    batch_spans = [
        [(0, 3), (4, 4), (5, 9), (10, 15)],
        [(1, 2), (6, 8)],
    ]
    S = max(len(spans) for spans in batch_spans)

    starts = np.zeros((B, S, 1), np.int32)
    ends = np.zeros((B, S, 1), np.int32)
    valid = np.zeros((B, S, 1), np.float32)
    for d, spans in enumerate(batch_spans):
        for i, (st, en) in enumerate(spans):
            starts[d, i, 0] = st
            ends[d, i, 0] = en
            valid[d, i, 0] = 1.0

    span_embeds, mention_scores = mention_score_forward(
        batch_embeds, jnp.asarray(starts), jnp.asarray(ends), jnp.asarray(valid), params)
    jax.block_until_ready((span_embeds, mention_scores))

    ref_embeds, ref_scores = ref_forward(batch_embeds, batch_spans, S, params)
    # bf16-MXU tolerance (the f64 reference is exact; kernel matmuls are bf16 x bf16 -> f32).
    np.testing.assert_allclose(np.asarray(span_embeds), ref_embeds, rtol=2e-2, atol=2e-2)
    np.testing.assert_allclose(np.asarray(mention_scores), ref_scores, rtol=2e-2, atol=2e-2)

    print("KERNEL_OK")
</pallas_src>

<mosaic_0001>
module attributes {stable_mosaic.version = 11 : i64} {
  func.func @_mention_score_kernel(%arg0: i32, %arg1: i32, %arg2: memref<4xi32, #tpu.memory_space<smem>>, %arg3: memref<1x16x128xbf16, #tpu.memory_space<vmem>>, %arg4: memref<128x256xbf16, #tpu.memory_space<vmem>>, %arg5: memref<1x256xf32, #tpu.memory_space<vmem>>, %arg6: memref<256x256xbf16, #tpu.memory_space<vmem>>, %arg7: memref<1x256xf32, #tpu.memory_space<vmem>>, %arg8: memref<1x256xf32, #tpu.memory_space<vmem>>, %arg9: memref<1x1xf32, #tpu.memory_space<smem>>, %arg10: memref<384x256xbf16, #tpu.memory_space<vmem>>, %arg11: memref<1x256xf32, #tpu.memory_space<vmem>>, %arg12: memref<256x256xbf16, #tpu.memory_space<vmem>>, %arg13: memref<1x256xf32, #tpu.memory_space<vmem>>, %arg14: memref<1x256xf32, #tpu.memory_space<vmem>>, %arg15: memref<1x1xf32, #tpu.memory_space<smem>>, %arg16: memref<1x8x3xi32, #tpu.memory_space<vmem>>, %arg17: memref<1x8x384xf32, #tpu.memory_space<vmem>>, %arg18: memref<1x1x8xf32, #tpu.memory_space<vmem>>, %arg19: memref<16x128xbf16, #tpu.memory_space<vmem>>, %arg20: memref<16x128xf32, #tpu.memory_space<vmem>>, %arg21: memref<8x128xf32, #tpu.memory_space<vmem>>) attributes {dimension_semantics = [#tpu.dimension_semantics<parallel>, #tpu.dimension_semantics<arbitrary>], iteration_bounds = array<i64: 2, 1>, scalar_prefetch = 1 : i64, scratch_operands = 3 : i64, tpu.core_type = #tpu.core_type<tc>, window_params = [{transform_indices = @transform_0, window_bounds = array<i64: 1, 16, 128>}, {pipeline_mode = #tpu.pipeline_mode<synchronous>, transform_indices = @transform_1, window_bounds = array<i64: 128, 256>}, {pipeline_mode = #tpu.pipeline_mode<synchronous>, transform_indices = @transform_2, window_bounds = array<i64: 1, 256>}, {pipeline_mode = #tpu.pipeline_mode<synchronous>, transform_indices = @transform_3, window_bounds = array<i64: 256, 256>}, {pipeline_mode = #tpu.pipeline_mode<synchronous>, transform_indices = @transform_4, window_bounds = array<i64: 1, 256>}, {pipeline_mode = #tpu.pipeline_mode<synchronous>, transform_indices = @transform_5, window_bounds = array<i64: 1, 256>}, {transform_indices = @transform_6, window_bounds = array<i64: 1, 1>}, {pipeline_mode = #tpu.pipeline_mode<synchronous>, transform_indices = @transform_7, window_bounds = array<i64: 384, 256>}, {pipeline_mode = #tpu.pipeline_mode<synchronous>, transform_indices = @transform_8, window_bounds = array<i64: 1, 256>}, {pipeline_mode = #tpu.pipeline_mode<synchronous>, transform_indices = @transform_9, window_bounds = array<i64: 256, 256>}, {pipeline_mode = #tpu.pipeline_mode<synchronous>, transform_indices = @transform_10, window_bounds = array<i64: 1, 256>}, {pipeline_mode = #tpu.pipeline_mode<synchronous>, transform_indices = @transform_11, window_bounds = array<i64: 1, 256>}, {transform_indices = @transform_12, window_bounds = array<i64: 1, 1>}, {transform_indices = @transform_13, window_bounds = array<i64: 1, 8, 3>}, {transform_indices = @transform_14, window_bounds = array<i64: 1, 8, 384>}, {transform_indices = @transform_15, window_bounds = array<i64: 1, 1, 8>}]} {
    %c0_i32 = arith.constant 0 : i32
    %0 = arith.cmpi eq, %arg1, %c0_i32 : i32
    %1 = arith.extui %0 : i1 to i32
    %c0_i32_0 = arith.constant 0 : i32
    %2 = arith.cmpi ne, %1, %c0_i32_0 : i32
    scf.if %2 {
      %c0_i32_55 = arith.constant 0 : i32
      %c1_i32_56 = arith.constant 1 : i32
      %88 = arith.muli %c0_i32_55, %c1_i32_56 : i32
      %c0_i32_57 = arith.constant 0 : i32
      %89 = arith.addi %c0_i32_57, %88 : i32
      %c16_i32_58 = arith.constant 16 : i32
      %90 = arith.muli %89, %c16_i32_58 : i32
      %91 = tpu.assume_multiple %90, 16 : i32
      %c0_59 = arith.constant 0 : index
      %92 = arith.index_cast %91 : i32 to index
      %c0_60 = arith.constant 0 : index
      %93 = vector.load %arg3[%c0_59, %92, %c0_60] : memref<1x16x128xbf16, #tpu.memory_space<vmem>>, vector<1x16x128xbf16>
      %94 = vector.shape_cast %93 : vector<1x16x128xbf16> to vector<16x128xbf16>
      %c0_61 = arith.constant 0 : index
      %c0_62 = arith.constant 0 : index
      %95 = vector.load %arg4[%c0_61, %c0_62] : memref<128x256xbf16, #tpu.memory_space<vmem>>, vector<128x256xbf16>
      %cst_63 = arith.constant dense<0.000000e+00> : vector<16x256xf32>
      %96 = tpu.matmul %94, %95, %cst_63 {dimension_numbers = #tpu.dot_dimension_numbers<[1], [0], [0], [1], [0, 0, 1, 1], [], []>} : vector<16x128xbf16>, vector<128x256xbf16>, vector<16x256xf32> -> vector<16x256xf32>
      %c0_64 = arith.constant 0 : index
      %c0_65 = arith.constant 0 : index
      %97 = vector.load %arg5[%c0_64, %c0_65] : memref<1x256xf32, #tpu.memory_space<vmem>>, vector<1x256xf32>
      %98 = vector.broadcast %97 : vector<1x256xf32> to vector<16x256xf32>
      %99 = arith.addf %96, %98 : vector<16x256xf32>
      %cst_66 = arith.constant 0.000000e+00 : f32
      %100 = vector.broadcast %cst_66 : f32 to vector<16x256xf32>
      %101 = arith.maximumf %99, %100 : vector<16x256xf32>
      %102 = arith.truncf %101 : vector<16x256xf32> to vector<16x256xbf16>
      %c0_67 = arith.constant 0 : index
      %c0_68 = arith.constant 0 : index
      %103 = vector.load %arg6[%c0_67, %c0_68] : memref<256x256xbf16, #tpu.memory_space<vmem>>, vector<256x256xbf16>
      %cst_69 = arith.constant dense<0.000000e+00> : vector<16x256xf32>
      %104 = tpu.matmul %102, %103, %cst_69 {dimension_numbers = #tpu.dot_dimension_numbers<[1], [0], [0], [1], [0, 0, 1, 1], [], []>} : vector<16x256xbf16>, vector<256x256xbf16>, vector<16x256xf32> -> vector<16x256xf32>
      %c0_70 = arith.constant 0 : index
      %c0_71 = arith.constant 0 : index
      %105 = vector.load %arg7[%c0_70, %c0_71] : memref<1x256xf32, #tpu.memory_space<vmem>>, vector<1x256xf32>
      %106 = vector.broadcast %105 : vector<1x256xf32> to vector<16x256xf32>
      %107 = arith.addf %104, %106 : vector<16x256xf32>
      %cst_72 = arith.constant 0.000000e+00 : f32
      %108 = vector.broadcast %cst_72 : f32 to vector<16x256xf32>
      %109 = arith.maximumf %107, %108 : vector<16x256xf32>
      %c0_73 = arith.constant 0 : index
      %c0_74 = arith.constant 0 : index
      %110 = vector.load %arg8[%c0_73, %c0_74] : memref<1x256xf32, #tpu.memory_space<vmem>>, vector<1x256xf32>
      %111 = vector.broadcast %110 : vector<1x256xf32> to vector<16x256xf32>
      %112 = arith.mulf %109, %111 : vector<16x256xf32>
      %cst_75 = arith.constant dense<0.000000e+00> : vector<16xf32>
      %113 = vector.multi_reduction <add>, %112, %cst_75 [1] : vector<16x256xf32> to vector<16xf32>
      %114 = vector.shape_cast %113 : vector<16xf32> to vector<16x1xf32>
      %c0_76 = arith.constant 0 : index
      %c0_77 = arith.constant 0 : index
      %115 = memref.load %arg9[%c0_76, %c0_77] : memref<1x1xf32, #tpu.memory_space<smem>>
      %116 = vector.broadcast %115 : f32 to vector<16x1xf32>
      %117 = arith.addf %114, %116 : vector<16x1xf32>
      %118 = arith.extf %94 : vector<16x128xbf16> to vector<16x128xf32>
      %119 = vector.broadcast %117 : vector<16x1xf32> to vector<16x128xf32>
      %120 = arith.mulf %118, %119 : vector<16x128xf32>
      %121 = arith.truncf %120 : vector<16x128xf32> to vector<16x128xbf16>
      %122 = arith.index_cast %91 : i32 to index
      %c0_78 = arith.constant 0 : index
      %123 = vector.load %arg19[%122, %c0_78] : memref<16x128xbf16, #tpu.memory_space<vmem>>, vector<16x128xbf16>
      tpu.vector_store %arg19[%122, %c0_78], %121 {strides = array<i32>} : memref<16x128xbf16, #tpu.memory_space<vmem>>, vector<16x128xbf16>,
      %c1_i32_79 = arith.constant 1 : i32
    } else {
    }
    %c0 = arith.constant 0 : index
    %c0_1 = arith.constant 0 : index
    %c0_2 = arith.constant 0 : index
    %3 = vector.load %arg16[%c0, %c0_1, %c0_2] : memref<1x8x3xi32, #tpu.memory_space<vmem>>, vector<1x8x3xi32>
    %4 = vector.shape_cast %3 : vector<1x8x3xi32> to vector<8x3xi32>
    %5 = vector.extract_strided_slice %4 {offsets = [0, 0], sizes = [8, 1], strides = [1, 1]} : vector<8x3xi32> to vector<8x1xi32>
    %6 = vector.extract_strided_slice %4 {offsets = [0, 1], sizes = [8, 1], strides = [1, 1]} : vector<8x3xi32> to vector<8x1xi32>
    %7 = vector.extract_strided_slice %4 {offsets = [0, 2], sizes = [8, 1], strides = [1, 1]} : vector<8x3xi32> to vector<8x1xi32>
    %8 = arith.sitofp %7 : vector<8x1xi32> to vector<8x1xf32>
    %9 = tpu.concatenate %5, %6 in 0 : vector<8x1xi32>, vector<8x1xi32> -> vector<16x1xi32>
    %c1_i32 = arith.constant 1 : i32
    %10 = arith.muli %arg0, %c1_i32 : i32
    %11 = arith.addi %10, %arg1 : i32
    %c2_i32 = arith.constant 2 : i32
    %12 = arith.muli %11, %c2_i32 : i32
    %13 = arith.index_cast %12 : i32 to index
    %14 = memref.load %arg2[%13] : memref<4xi32, #tpu.memory_space<smem>>
    %c1_i32_3 = arith.constant 1 : i32
    %15 = arith.muli %arg0, %c1_i32_3 : i32
    %16 = arith.addi %15, %arg1 : i32
    %c2_i32_4 = arith.constant 2 : i32
    %17 = arith.muli %16, %c2_i32_4 : i32
    %c1_i32_5 = arith.constant 1 : i32
    %18 = arith.addi %17, %c1_i32_5 : i32
    %19 = arith.index_cast %18 : i32 to index
    %20 = memref.load %arg2[%19] : memref<4xi32, #tpu.memory_space<smem>>
    %cst = arith.constant 0.000000e+00 : f32
    %21 = vector.broadcast %cst : f32 to vector<16x128xf32>
    %c0_6 = arith.constant 0 : index
    %c0_7 = arith.constant 0 : index
    %22 = vector.load %arg20[%c0_6, %c0_7] : memref<16x128xf32, #tpu.memory_space<vmem>>, vector<16x128xf32>
    tpu.vector_store %arg20[%c0_6, %c0_7], %21 {strides = array<i32>} : memref<16x128xf32, #tpu.memory_space<vmem>>, vector<16x128xf32>,
    %cst_8 = arith.constant 0.000000e+00 : f32
    %23 = vector.broadcast %cst_8 : f32 to vector<8x128xf32>
    %c0_9 = arith.constant 0 : index
    %c0_10 = arith.constant 0 : index
    %24 = vector.load %arg21[%c0_9, %c0_10] : memref<8x128xf32, #tpu.memory_space<vmem>>, vector<8x128xf32>
    tpu.vector_store %arg21[%c0_9, %c0_10], %23 {strides = array<i32>} : memref<8x128xf32, #tpu.memory_space<vmem>>, vector<8x128xf32>,
    %c0_i32_11 = arith.constant 0 : i32
    %c1_i32_12 = arith.constant 1 : i32
    %25 = arith.muli %c0_i32_11, %c1_i32_12 : i32
    %c0_i32_13 = arith.constant 0 : i32
    %26 = arith.addi %c0_i32_13, %25 : i32
    %c16_i32 = arith.constant 16 : i32
    %27 = arith.muli %26, %c16_i32 : i32
    %28 = tpu.assume_multiple %27, 16 : i32
    %29 = arith.cmpi sle, %28, %20 : i32
    %c16_i32_14 = arith.constant 16 : i32
    %30 = arith.addi %28, %c16_i32_14 : i32
    %31 = arith.cmpi sgt, %30, %14 : i32
    %32 = arith.andi %29, %31 : i1
    %33 = arith.extui %32 : i1 to i32
    %c0_i32_15 = arith.constant 0 : i32
    %34 = arith.cmpi ne, %33, %c0_i32_15 : i32
    scf.if %34 {
      %88 = tpu.iota {dimensions = array<i32: 1>} : vector<16x16xi32>
      %89 = vector.broadcast %28 : i32 to vector<16x16xi32>
      %90 = arith.addi %88, %89 : vector<16x16xi32>
      %91 = vector.broadcast %9 : vector<16x1xi32> to vector<16x16xi32>
      %92 = arith.cmpi eq, %90, %91 : vector<16x16xi32>
      %93 = arith.extui %92 : vector<16x16xi1> to vector<16x16xi32>
      %94 = arith.sitofp %93 : vector<16x16xi32> to vector<16x16xf32>
      %95 = arith.truncf %94 : vector<16x16xf32> to vector<16x16xbf16>
      %96 = vector.extract_strided_slice %90 {offsets = [0, 0], sizes = [8, 16], strides = [1, 1]} : vector<16x16xi32> to vector<8x16xi32>
      %97 = vector.broadcast %5 : vector<8x1xi32> to vector<8x16xi32>
      %98 = arith.cmpi sge, %96, %97 : vector<8x16xi32>
      %99 = vector.broadcast %6 : vector<8x1xi32> to vector<8x16xi32>
      %100 = arith.cmpi sle, %96, %99 : vector<8x16xi32>
      %101 = arith.andi %98, %100 : vector<8x16xi1>
      %102 = arith.extui %101 : vector<8x16xi1> to vector<8x16xi32>
      %103 = arith.sitofp %102 : vector<8x16xi32> to vector<8x16xf32>
      %104 = arith.truncf %103 : vector<8x16xf32> to vector<8x16xbf16>
      %c0_55 = arith.constant 0 : index
      %105 = arith.index_cast %28 : i32 to index
      %c0_56 = arith.constant 0 : index
      %106 = vector.load %arg3[%c0_55, %105, %c0_56] : memref<1x16x128xbf16, #tpu.memory_space<vmem>>, vector<1x16x128xbf16>
      %107 = vector.shape_cast %106 : vector<1x16x128xbf16> to vector<16x128xbf16>
      %c0_57 = arith.constant 0 : index
      %c0_58 = arith.constant 0 : index
      %108 = vector.load %arg20[%c0_57, %c0_58] : memref<16x128xf32, #tpu.memory_space<vmem>>, vector<16x128xf32>
      %cst_59 = arith.constant dense<0.000000e+00> : vector<16x128xf32>
      %109 = tpu.matmul %95, %107, %cst_59 {dimension_numbers = #tpu.dot_dimension_numbers<[1], [0], [0], [1], [0, 0, 1, 1], [], []>} : vector<16x16xbf16>, vector<16x128xbf16>, vector<16x128xf32> -> vector<16x128xf32>
      %110 = arith.addf %108, %109 : vector<16x128xf32>
      %c0_60 = arith.constant 0 : index
      %c0_61 = arith.constant 0 : index
      %111 = vector.load %arg20[%c0_60, %c0_61] : memref<16x128xf32, #tpu.memory_space<vmem>>, vector<16x128xf32>
      tpu.vector_store %arg20[%c0_60, %c0_61], %110 {strides = array<i32>} : memref<16x128xf32, #tpu.memory_space<vmem>>, vector<16x128xf32>,
      %c0_62 = arith.constant 0 : index
      %c0_63 = arith.constant 0 : index
      %112 = vector.load %arg21[%c0_62, %c0_63] : memref<8x128xf32, #tpu.memory_space<vmem>>, vector<8x128xf32>
      %113 = arith.index_cast %28 : i32 to index
      %c0_64 = arith.constant 0 : index
      %114 = vector.load %arg19[%113, %c0_64] : memref<16x128xbf16, #tpu.memory_space<vmem>>, vector<16x128xbf16>
      %cst_65 = arith.constant dense<0.000000e+00> : vector<8x128xf32>
      %115 = tpu.matmul %104, %114, %cst_65 {dimension_numbers = #tpu.dot_dimension_numbers<[1], [0], [0], [1], [0, 0, 1, 1], [], []>} : vector<8x16xbf16>, vector<16x128xbf16>, vector<8x128xf32> -> vector<8x128xf32>
      %116 = arith.addf %112, %115 : vector<8x128xf32>
      %c0_66 = arith.constant 0 : index
      %c0_67 = arith.constant 0 : index
      %117 = vector.load %arg21[%c0_66, %c0_67] : memref<8x128xf32, #tpu.memory_space<vmem>>, vector<8x128xf32>
      tpu.vector_store %arg21[%c0_66, %c0_67], %116 {strides = array<i32>} : memref<8x128xf32, #tpu.memory_space<vmem>>, vector<8x128xf32>,
    } else {
    }
    %c1_i32_16 = arith.constant 1 : i32
    %c0_17 = arith.constant 0 : index
    %c0_18 = arith.constant 0 : index
    %35 = vector.load %arg20[%c0_17, %c0_18] : memref<16x128xf32, #tpu.memory_space<vmem>>, vector<8x128xf32>
    %36 = vector.broadcast %8 : vector<8x1xf32> to vector<8x128xf32>
    %37 = arith.mulf %35, %36 : vector<8x128xf32>
    %c8 = arith.constant 8 : index
    %c0_19 = arith.constant 0 : index
    %38 = vector.load %arg20[%c8, %c0_19] : memref<16x128xf32, #tpu.memory_space<vmem>>, vector<8x128xf32>
    %39 = vector.broadcast %8 : vector<8x1xf32> to vector<8x128xf32>
    %40 = arith.mulf %38, %39 : vector<8x128xf32>
    %c0_20 = arith.constant 0 : index
    %c0_21 = arith.constant 0 : index
    %41 = vector.load %arg21[%c0_20, %c0_21] : memref<8x128xf32, #tpu.memory_space<vmem>>, vector<8x128xf32>
    %42 = vector.broadcast %8 : vector<8x1xf32> to vector<8x128xf32>
    %43 = arith.mulf %41, %42 : vector<8x128xf32>
    %c0_22 = arith.constant 0 : index
    %c0_23 = arith.constant 0 : index
    %c0_24 = arith.constant 0 : index
    %44 = vector.load %arg17[%c0_22, %c0_23, %c0_24] : memref<1x8x384xf32, #tpu.memory_space<vmem>>, vector<1x8x128xf32>
    %45 = vector.shape_cast %44 : vector<1x8x128xf32> to vector<8x128xf32>
    %46 = vector.shape_cast %37 : vector<8x128xf32> to vector<1x8x128xf32>
    tpu.vector_store %arg17[%c0_22, %c0_23, %c0_24], %46 {strides = array<i32>} : memref<1x8x384xf32, #tpu.memory_space<vmem>>, vector<1x8x128xf32>,
    %c0_25 = arith.constant 0 : index
    %c0_26 = arith.constant 0 : index
    %c128 = arith.constant 128 : index
    %47 = vector.load %arg17[%c0_25, %c0_26, %c128] : memref<1x8x384xf32, #tpu.memory_space<vmem>>, vector<1x8x128xf32>
    %48 = vector.shape_cast %47 : vector<1x8x128xf32> to vector<8x128xf32>
    %49 = vector.shape_cast %40 : vector<8x128xf32> to vector<1x8x128xf32>
    tpu.vector_store %arg17[%c0_25, %c0_26, %c128], %49 {strides = array<i32>} : memref<1x8x384xf32, #tpu.memory_space<vmem>>, vector<1x8x128xf32>,
    %c0_27 = arith.constant 0 : index
    %c0_28 = arith.constant 0 : index
    %c256 = arith.constant 256 : index
    %50 = vector.load %arg17[%c0_27, %c0_28, %c256] : memref<1x8x384xf32, #tpu.memory_space<vmem>>, vector<1x8x128xf32>
    %51 = vector.shape_cast %50 : vector<1x8x128xf32> to vector<8x128xf32>
    %52 = vector.shape_cast %43 : vector<8x128xf32> to vector<1x8x128xf32>
    tpu.vector_store %arg17[%c0_27, %c0_28, %c256], %52 {strides = array<i32>} : memref<1x8x384xf32, #tpu.memory_space<vmem>>, vector<1x8x128xf32>,
    %53 = arith.truncf %37 : vector<8x128xf32> to vector<8x128xbf16>
    %c0_29 = arith.constant 0 : index
    %c0_30 = arith.constant 0 : index
    %54 = vector.load %arg10[%c0_29, %c0_30] : memref<384x256xbf16, #tpu.memory_space<vmem>>, vector<128x256xbf16>
    %cst_31 = arith.constant dense<0.000000e+00> : vector<8x256xf32>
    %55 = tpu.matmul %53, %54, %cst_31 {dimension_numbers = #tpu.dot_dimension_numbers<[1], [0], [0], [1], [0, 0, 1, 1], [], []>} : vector<8x128xbf16>, vector<128x256xbf16>, vector<8x256xf32> -> vector<8x256xf32>
    %56 = arith.truncf %40 : vector<8x128xf32> to vector<8x128xbf16>
    %c128_32 = arith.constant 128 : index
    %c0_33 = arith.constant 0 : index
    %57 = vector.load %arg10[%c128_32, %c0_33] : memref<384x256xbf16, #tpu.memory_space<vmem>>, vector<128x256xbf16>
    %cst_34 = arith.constant dense<0.000000e+00> : vector<8x256xf32>
    %58 = tpu.matmul %56, %57, %cst_34 {dimension_numbers = #tpu.dot_dimension_numbers<[1], [0], [0], [1], [0, 0, 1, 1], [], []>} : vector<8x128xbf16>, vector<128x256xbf16>, vector<8x256xf32> -> vector<8x256xf32>
    %59 = arith.addf %55, %58 : vector<8x256xf32>
    %60 = arith.truncf %43 : vector<8x128xf32> to vector<8x128xbf16>
    %c256_35 = arith.constant 256 : index
    %c0_36 = arith.constant 0 : index
    %61 = vector.load %arg10[%c256_35, %c0_36] : memref<384x256xbf16, #tpu.memory_space<vmem>>, vector<128x256xbf16>
    %cst_37 = arith.constant dense<0.000000e+00> : vector<8x256xf32>
    %62 = tpu.matmul %60, %61, %cst_37 {dimension_numbers = #tpu.dot_dimension_numbers<[1], [0], [0], [1], [0, 0, 1, 1], [], []>} : vector<8x128xbf16>, vector<128x256xbf16>, vector<8x256xf32> -> vector<8x256xf32>
    %63 = arith.addf %59, %62 : vector<8x256xf32>
    %c0_38 = arith.constant 0 : index
    %c0_39 = arith.constant 0 : index
    %64 = vector.load %arg11[%c0_38, %c0_39] : memref<1x256xf32, #tpu.memory_space<vmem>>, vector<1x256xf32>
    %65 = vector.broadcast %64 : vector<1x256xf32> to vector<8x256xf32>
    %66 = arith.addf %63, %65 : vector<8x256xf32>
    %cst_40 = arith.constant 0.000000e+00 : f32
    %67 = vector.broadcast %cst_40 : f32 to vector<8x256xf32>
    %68 = arith.maximumf %66, %67 : vector<8x256xf32>
    %69 = arith.truncf %68 : vector<8x256xf32> to vector<8x256xbf16>
    %c0_41 = arith.constant 0 : index
    %c0_42 = arith.constant 0 : index
    %70 = vector.load %arg12[%c0_41, %c0_42] : memref<256x256xbf16, #tpu.memory_space<vmem>>, vector<256x256xbf16>
    %cst_43 = arith.constant dense<0.000000e+00> : vector<8x256xf32>
    %71 = tpu.matmul %69, %70, %cst_43 {dimension_numbers = #tpu.dot_dimension_numbers<[1], [0], [0], [1], [0, 0, 1, 1], [], []>} : vector<8x256xbf16>, vector<256x256xbf16>, vector<8x256xf32> -> vector<8x256xf32>
    %c0_44 = arith.constant 0 : index
    %c0_45 = arith.constant 0 : index
    %72 = vector.load %arg13[%c0_44, %c0_45] : memref<1x256xf32, #tpu.memory_space<vmem>>, vector<1x256xf32>
    %73 = vector.broadcast %72 : vector<1x256xf32> to vector<8x256xf32>
    %74 = arith.addf %71, %73 : vector<8x256xf32>
    %cst_46 = arith.constant 0.000000e+00 : f32
    %75 = vector.broadcast %cst_46 : f32 to vector<8x256xf32>
    %76 = arith.maximumf %74, %75 : vector<8x256xf32>
    %c0_47 = arith.constant 0 : index
    %c0_48 = arith.constant 0 : index
    %77 = vector.load %arg14[%c0_47, %c0_48] : memref<1x256xf32, #tpu.memory_space<vmem>>, vector<1x256xf32>
    %78 = vector.broadcast %77 : vector<1x256xf32> to vector<8x256xf32>
    %79 = arith.mulf %76, %78 : vector<8x256xf32>
    %cst_49 = arith.constant dense<0.000000e+00> : vector<8xf32>
    %80 = vector.multi_reduction <add>, %79, %cst_49 [1] : vector<8x256xf32> to vector<8xf32>
    %c0_50 = arith.constant 0 : index
    %c0_51 = arith.constant 0 : index
    %81 = memref.load %arg15[%c0_50, %c0_51] : memref<1x1xf32, #tpu.memory_space<smem>>
    %82 = vector.broadcast %81 : f32 to vector<8xf32>
    %83 = arith.addf %80, %82 : vector<8xf32>
    %84 = vector.shape_cast %83 : vector<8xf32> to vector<1x8xf32>
    %c0_52 = arith.constant 0 : index
    %c0_53 = arith.constant 0 : index
    %c0_54 = arith.constant 0 : index
    %85 = vector.load %arg18[%c0_52, %c0_53, %c0_54] : memref<1x1x8xf32, #tpu.memory_space<vmem>>, vector<1x1x8xf32>
    %86 = vector.shape_cast %85 : vector<1x1x8xf32> to vector<1x8xf32>
    %87 = vector.shape_cast %84 : vector<1x8xf32> to vector<1x1x8xf32>
    tpu.vector_store %arg18[%c0_52, %c0_53, %c0_54], %87 {strides = array<i32>} : memref<1x1x8xf32, #tpu.memory_space<vmem>>, vector<1x1x8xf32>,
    return
  }
  func.func @transform_0(%arg0: i32, %arg1: i32, %arg2: memref<4xi32, #tpu.memory_space<smem>>) -> (i32, i32, i32) {
    %c0_i32 = arith.constant 0 : i32
    %c0_i32_0 = arith.constant 0 : i32
    %c0_i32_1 = arith.constant 0 : i32
    return %arg0, %c0_i32, %c0_i32_0 : i32, i32, i32
  }
  func.func @transform_1(%arg0: i32, %arg1: i32, %arg2: memref<4xi32, #tpu.memory_space<smem>>) -> (i32, i32) {
    %c0_i32 = arith.constant 0 : i32
    %c0_i32_0 = arith.constant 0 : i32
    %c0_i32_1 = arith.constant 0 : i32
    return %c0_i32, %c0_i32_0 : i32, i32
  }
  func.func @transform_2(%arg0: i32, %arg1: i32, %arg2: memref<4xi32, #tpu.memory_space<smem>>) -> (i32, i32) {
    %c0_i32 = arith.constant 0 : i32
    %c0_i32_0 = arith.constant 0 : i32
    %c0_i32_1 = arith.constant 0 : i32
    return %c0_i32, %c0_i32_0 : i32, i32
  }
  func.func @transform_3(%arg0: i32, %arg1: i32, %arg2: memref<4xi32, #tpu.memory_space<smem>>) -> (i32, i32) {
    %c0_i32 = arith.constant 0 : i32
    %c0_i32_0 = arith.constant 0 : i32
    %c0_i32_1 = arith.constant 0 : i32
    return %c0_i32, %c0_i32_0 : i32, i32
  }
  func.func @transform_4(%arg0: i32, %arg1: i32, %arg2: memref<4xi32, #tpu.memory_space<smem>>) -> (i32, i32) {
    %c0_i32 = arith.constant 0 : i32
    %c0_i32_0 = arith.constant 0 : i32
    %c0_i32_1 = arith.constant 0 : i32
    return %c0_i32, %c0_i32_0 : i32, i32
  }
  func.func @transform_5(%arg0: i32, %arg1: i32, %arg2: memref<4xi32, #tpu.memory_space<smem>>) -> (i32, i32) {
    %c0_i32 = arith.constant 0 : i32
    %c0_i32_0 = arith.constant 0 : i32
    %c0_i32_1 = arith.constant 0 : i32
    return %c0_i32, %c0_i32_0 : i32, i32
  }
  func.func @transform_6(%arg0: i32, %arg1: i32, %arg2: memref<4xi32, #tpu.memory_space<smem>>) -> (i32, i32) {
    %c0_i32 = arith.constant 0 : i32
    %c0_i32_0 = arith.constant 0 : i32
    %c0_i32_1 = arith.constant 0 : i32
    return %c0_i32, %c0_i32_0 : i32, i32
  }
  func.func @transform_7(%arg0: i32, %arg1: i32, %arg2: memref<4xi32, #tpu.memory_space<smem>>) -> (i32, i32) {
    %c0_i32 = arith.constant 0 : i32
    %c0_i32_0 = arith.constant 0 : i32
    %c0_i32_1 = arith.constant 0 : i32
    return %c0_i32, %c0_i32_0 : i32, i32
  }
  func.func @transform_8(%arg0: i32, %arg1: i32, %arg2: memref<4xi32, #tpu.memory_space<smem>>) -> (i32, i32) {
    %c0_i32 = arith.constant 0 : i32
    %c0_i32_0 = arith.constant 0 : i32
    %c0_i32_1 = arith.constant 0 : i32
    return %c0_i32, %c0_i32_0 : i32, i32
  }
  func.func @transform_9(%arg0: i32, %arg1: i32, %arg2: memref<4xi32, #tpu.memory_space<smem>>) -> (i32, i32) {
    %c0_i32 = arith.constant 0 : i32
    %c0_i32_0 = arith.constant 0 : i32
    %c0_i32_1 = arith.constant 0 : i32
    return %c0_i32, %c0_i32_0 : i32, i32
  }
  func.func @transform_10(%arg0: i32, %arg1: i32, %arg2: memref<4xi32, #tpu.memory_space<smem>>) -> (i32, i32) {
    %c0_i32 = arith.constant 0 : i32
    %c0_i32_0 = arith.constant 0 : i32
    %c0_i32_1 = arith.constant 0 : i32
    return %c0_i32, %c0_i32_0 : i32, i32
  }
  func.func @transform_11(%arg0: i32, %arg1: i32, %arg2: memref<4xi32, #tpu.memory_space<smem>>) -> (i32, i32) {
    %c0_i32 = arith.constant 0 : i32
    %c0_i32_0 = arith.constant 0 : i32
    %c0_i32_1 = arith.constant 0 : i32
    return %c0_i32, %c0_i32_0 : i32, i32
  }
  func.func @transform_12(%arg0: i32, %arg1: i32, %arg2: memref<4xi32, #tpu.memory_space<smem>>) -> (i32, i32) {
    %c0_i32 = arith.constant 0 : i32
    %c0_i32_0 = arith.constant 0 : i32
    %c0_i32_1 = arith.constant 0 : i32
    return %c0_i32, %c0_i32_0 : i32, i32
  }
  func.func @transform_13(%arg0: i32, %arg1: i32, %arg2: memref<4xi32, #tpu.memory_space<smem>>) -> (i32, i32, i32) {
    %c0_i32 = arith.constant 0 : i32
    %c0_i32_0 = arith.constant 0 : i32
    return %arg0, %arg1, %c0_i32 : i32, i32, i32
  }
  func.func @transform_14(%arg0: i32, %arg1: i32, %arg2: memref<4xi32, #tpu.memory_space<smem>>) -> (i32, i32, i32) {
    %c0_i32 = arith.constant 0 : i32
    %c0_i32_0 = arith.constant 0 : i32
    return %arg0, %arg1, %c0_i32 : i32, i32, i32
  }
  func.func @transform_15(%arg0: i32, %arg1: i32, %arg2: memref<4xi32, #tpu.memory_space<smem>>) -> (i32, i32, i32) {
    %c0_i32 = arith.constant 0 : i32
    %c0_i32_0 = arith.constant 0 : i32
    return %arg0, %c0_i32, %arg1 : i32, i32, i32
  }
}

</mosaic_0001>

<llo_original>
// kernel: tpu_custom_call.1
$region0: #{tpu_custom_call.1}
  #allocation0 [shape = 'u32[]', space=smem, size = 0x4, offset = 0x4, fixed_abs, tag = 'smem constant byte address 0x4 - core index']
  #allocation1 [shape = 'u32[144,128]{1,0:T(1,128)}', space=vmem, size = 0x12000, scoped, tag = 'internal scratch']
  #allocation2 [shape = 'bf16[16,128]{1,0:T(16,128)(2,1)}', space=vmem, size = 0x1000, scoped, tag = 'scratch operand']
  #allocation3 [shape = 'f32[16,128]{1,0:T(8,128)}', space=vmem, size = 0x2000, scoped, tag = 'scratch operand']
  #allocation4 [shape = 'f32[8,128]{1,0:T(8,128)}', space=vmem, size = 0x1000, scoped, tag = 'scratch operand']
  #allocation5 [shape = 's32[1]{0}', space=sflag, size = 0x4, scoped, tag = 'scoped memory for tpu_custom_call.1']
  #allocation6 [shape = 'u8[512]{0}', space=smem, size = 0x200, scoped, tag = 'prefetched SMEM operand 0']
  #allocation7 [shape = 'f32[1,1]{1,0:T(1,128)S(6)}', space=smem, size = 0x200, scoped, tag = 'scoped memory for tpu_custom_call.1']
  #allocation8 [shape = 'f32[1,1]{1,0:T(1,128)S(6)}', space=smem, size = 0x200, scoped, tag = 'scoped memory for tpu_custom_call.1']
  %s0 = inlined_call_operand.vmem [shape: s32[4], index: 0, kind: input, shape index: {}]
  %s1 = inlined_call_operand.vmem [shape: bf16[2,16,128], index: 1, kind: input, shape index: {}]
  %s2 = inlined_call_operand.hbm [shape: bf16[128,256], index: 2, kind: input, shape index: {}]
  %s3 = inlined_call_operand.vmem [shape: f32[1,256], index: 3, kind: input, shape index: {}]
  %s4 = inlined_call_operand.hbm [shape: bf16[256,256], index: 4, kind: input, shape index: {}]
  %s5 = inlined_call_operand.vmem [shape: f32[1,256], index: 5, kind: input, shape index: {}]
  %s6 = inlined_call_operand.vmem [shape: f32[1,256], index: 6, kind: input, shape index: {}]
  %s7 = inlined_call_operand.<no memory space> [shape: f32[1,1], index: 7, kind: input, shape index: {}]
  %s8 = inlined_call_operand.hbm [shape: bf16[384,256], index: 8, kind: input, shape index: {}]
  %s9 = inlined_call_operand.vmem [shape: f32[1,256], index: 9, kind: input, shape index: {}]
  %s10 = inlined_call_operand.hbm [shape: bf16[256,256], index: 10, kind: input, shape index: {}]
  %s11 = inlined_call_operand.vmem [shape: f32[1,256], index: 11, kind: input, shape index: {}]
  %s12 = inlined_call_operand.vmem [shape: f32[1,256], index: 12, kind: input, shape index: {}]
  %s13 = inlined_call_operand.<no memory space> [shape: f32[1,1], index: 13, kind: input, shape index: {}]
  %s14 = inlined_call_operand.vmem [shape: s32[2,8,3], index: 14, kind: input, shape index: {}]
  %s15 = inlined_call_operand.hbm [shape: f32[2,8,384], index: 15, kind: output, shape index: {0}]
  %s16 = inlined_call_operand.hbm [shape: f32[2,1,8], index: 16, kind: output, shape index: {1}]
  %17 = xla_tuple %s15, %s16
  %s18 = sld [smem:[#allocation0]]
  $region121: #{tpu_custom_call.1} parent=0
    _
  %s20 = ssub.s32 1, %s18
  %s21 = scalar_select 0, %s20, %s18
  %s22 = sshll.u32 %s0, 4
  %s23 = int_to_ptr.vmem [resolvable:$true] %s22
  %25 = dma.vmem_to_smem %s23, 16, [#allocation6], [#allocation5]
  %26 = sst [smem:[#allocation7]] %s7
  %27 = sst [smem:[#allocation8]] %s13
  %28 = dma.done [#allocation5], 16
  %29 = sfence
  $region1: #{tpu_custom_call.1} parent=0
    #allocation9 [shape = 'u8[65536]{0}', space=vmem, size = 0x10000, scoped, tag = 'input window, operand 2, single buffered']
    #allocation10 [shape = 's32[2]{0}', space=sflag, size = 0x8, scoped, tag = 'scoped memory for tpu_custom_call.1']
    #allocation11 [shape = 's32[2]{0}', space=sflag, size = 0x8, scoped, tag = 'scoped memory for tpu_custom_call.1']
    #allocation12 [shape = 'u8[131072]{0}', space=vmem, size = 0x20000, scoped, tag = 'input window, operand 4, single buffered']
    #allocation13 [shape = 's32[1]{0}', space=sflag, size = 0x4, scoped, tag = 'scoped memory for tpu_custom_call.1']
    #allocation14 [shape = 'u8[196608]{0}', space=vmem, size = 0x30000, scoped, tag = 'input window, operand 8, single buffered']
    #allocation15 [shape = 'u8[131072]{0}', space=vmem, size = 0x20000, scoped, tag = 'input window, operand 10, single buffered']
    #allocation16 [shape = 's32[1]{0}', space=sflag, size = 0x4, scoped, tag = 'scoped memory for tpu_custom_call.1']
    #allocation17 [shape = 'u8[24576]{0}', space=vmem, size = 0x6000, scoped, tag = 'output window, operand 0']
    #allocation18 [shape = 'u8[1024]{0}', space=vmem, size = 0x400, scoped, tag = 'output window, operand 1']
    #allocation19 [shape = 's32[2]{0}', space=sflag, size = 0x8, scoped, tag = 'scoped memory for tpu_custom_call.1']
    %30 = vsyncpa [#allocation10], 0
    %31 = vsyncpa [#allocation13], 0
    %32 = vsyncpa [#allocation16], 0
    %33 = vsyncpa [#allocation11], 0
    %s34 = scalar_lea.sflag [#allocation11], 1
    %35 = vsyncpa %s34, 0
    %36 = vsyncpa [#allocation19], 0
    %s37 = scalar_lea.sflag [#allocation19], 1
    %38 = vsyncpa %s37, 0
    loop: start=0, step=1, limit=4
    $region2: #{tpu_custom_call.1} parent=1 // loop_pre_header
      _
    $region3: #{tpu_custom_call.1} parent=1 // loop_header
      %s40 = sphi 0, %s44
      %p41 = scmp.ge.s32.totalorder %s40, 4
      %s47 = sphi 0, %s59
      %s48 = sphi 0, %s55
      %s49 = sphi 0, %s47
      %s50 = sphi 0, %s48
      %s51 = sphi 0, %s49
      %s52 = sphi 0, %s50
      %s62 = sphi 0, %s64
      %s65 = sphi 0, %s62
      %s66 = sphi 0, %s65
      %s82 = sphi 0, %s66
      %s86 = sphi 0, %s86
      %s88 = sphi 0, %s86
      %s89 = sphi 0, %s88
      %s103 = sphi 0, %s89
      %s107 = sphi 0, %s107
      %s109 = sphi 0, %s107
      %s110 = sphi 0, %s109
      %s124 = sphi 0, %s110
      %s128 = sphi 0, %s128
      %s130 = sphi 0, %s128
      %s131 = sphi 0, %s130
      %s145 = sphi 0, %s131
      %s149 = sphi 0, %s149
      %s151 = sphi 0, %s149
      %s152 = sphi 0, %s151
      %s166 = sphi 0, %s152
      %s170 = sphi 0, %s170
      %s172 = sphi 0, %s170
      %s173 = sphi 0, %s172
      %s187 = sphi 0, %s173
      %s191 = sphi 0, %s191
      %s193 = sphi 0, %s191
      %s194 = sphi 0, %s193
      %s208 = sphi 0, %s194
      %s212 = sphi 0, %s212
      %s214 = sphi 0, %s212
      %s215 = sphi 0, %s214
      %s229 = sphi 0, %s215
      %s233 = sphi 0, %s233
      %s235 = sphi 0, %s233
      %s236 = sphi 0, %s235
      %s250 = sphi 0, %s236
      %s254 = sphi 0, %s254
      %s256 = sphi 0, %s254
      %s257 = sphi 0, %s256
      %s271 = sphi 0, %s257
      %s275 = sphi 0, %s275
      %s277 = sphi 0, %s275
      %s278 = sphi 0, %s277
      %s292 = sphi 0, %s278
      %s296 = sphi 0, %s296
      %s298 = sphi 0, %s296
      %s299 = sphi 0, %s298
      %s313 = sphi 0, %s299
      %s317 = sphi 0, %s317
      %s319 = sphi 0, %s317
      %s320 = sphi 0, %s319
      %s334 = sphi 0, %s320
      %s342 = sphi 0, %s344
      %s345 = sphi 0, %s342
      %s346 = sphi 0, %s345
      %s362 = sphi 0, %s346
      %s370 = sphi 0, %s372
      %s373 = sphi 0, %s370
      %s374 = sphi 0, %s373
      %s390 = sphi 0, %s374
      %s398 = sphi 0, %s400
      %s401 = sphi 0, %s398
      %s402 = sphi 0, %s401
      %s418 = sphi 0, %s402
    $region4: #{tpu_custom_call.1} parent=1 // loop_header_branch
      %43 = sbr.rel (%p41) target = $region8
    $region5: #{tpu_custom_call.1} parent=1 // loop_body
      %s45 = ssub.s32 %s40, 1
      %s46 = ssub.s32 %s40, 2
      %s53 = sadd.s32 1, %s48
      %p54 = scmp.ge.s32.totalorder %s53, 1
      %s55 = scalar_select %p54, 0, %s53
      %s56 = sadd.s32 1, %s47
      %s57 = scalar_select %p54, %s56, %s47
      %p58 = scmp.ge.s32.totalorder %s57, 2
      %s59 = scalar_select %p58, 0, %s57
      %s60 = ssub.s32 %s47, %s59
      %p61 = scmp.eq.s32.totalorder %s60, 0
      %s63 = sadd.s32 %s62, 1
      %s64 = scalar_select %p61, %s62, %s63
      %p67 = pneg %p61
      %p68 = scmp.eq.s32.totalorder %s40, 1
      %p69 = por %p67, %p68
      %p70 = scmp.ne.s32.totalorder %s62, %s65
      %p71 = scmp.eq.s32.totalorder %s40, 0
      %p72 = por %p70, %p71
      %p73 = scmp.ne.s32.totalorder %s62, %s65
      %p74 = scmp.eq.s32.totalorder %s45, 1
      %p75 = por %p73, %p74
      %p76 = scmp.ne.s32.totalorder %s65, %s66
      %p77 = scmp.eq.s32.totalorder %s45, 0
      %p78 = por %p76, %p77
      %p79 = scmp.ne.s32.totalorder %s65, %s66
      %p80 = scmp.eq.s32.totalorder %s46, 1
      %p81 = por %p79, %p80
      %p83 = scmp.ne.s32.totalorder %s66, %s82
      %p84 = scmp.eq.s32.totalorder %s46, 0
      %p85 = por %p83, %p84
      %s87 = sadd.s32 %s86, 1
      %p90 = scmp.eq.s32.totalorder %s40, 1
      %p91 = scmp.ne.s32.totalorder %s86, %s88
      %p92 = scmp.eq.s32.totalorder %s40, 0
      %p93 = por %p91, %p92
      %p94 = scmp.ne.s32.totalorder %s86, %s88
      %p95 = scmp.eq.s32.totalorder %s45, 1
      %p96 = por %p94, %p95
      %p97 = scmp.ne.s32.totalorder %s88, %s89
      %p98 = scmp.eq.s32.totalorder %s45, 0
      %p99 = por %p97, %p98
      %p100 = scmp.ne.s32.totalorder %s88, %s89
      %p101 = scmp.eq.s32.totalorder %s46, 1
      %p102 = por %p100, %p101
      %p104 = scmp.ne.s32.totalorder %s89, %s103
      %p105 = scmp.eq.s32.totalorder %s46, 0
      %p106 = por %p104, %p105
      %s108 = sadd.s32 %s107, 1
      %p111 = scmp.eq.s32.totalorder %s40, 1
      %p112 = scmp.ne.s32.totalorder %s107, %s109
      %p113 = scmp.eq.s32.totalorder %s40, 0
      %p114 = por %p112, %p113
      %p115 = scmp.ne.s32.totalorder %s107, %s109
      %p116 = scmp.eq.s32.totalorder %s45, 1
      %p117 = por %p115, %p116
      %p118 = scmp.ne.s32.totalorder %s109, %s110
      %p119 = scmp.eq.s32.totalorder %s45, 0
      %p120 = por %p118, %p119
      %p121 = scmp.ne.s32.totalorder %s109, %s110
      %p122 = scmp.eq.s32.totalorder %s46, 1
      %p123 = por %p121, %p122
      %p125 = scmp.ne.s32.totalorder %s110, %s124
      %p126 = scmp.eq.s32.totalorder %s46, 0
      %p127 = por %p125, %p126
      %s129 = sadd.s32 %s128, 1
      %p132 = scmp.eq.s32.totalorder %s40, 1
      %p133 = scmp.ne.s32.totalorder %s128, %s130
      %p134 = scmp.eq.s32.totalorder %s40, 0
      %p135 = por %p133, %p134
      %p136 = scmp.ne.s32.totalorder %s128, %s130
      %p137 = scmp.eq.s32.totalorder %s45, 1
      %p138 = por %p136, %p137
      %p139 = scmp.ne.s32.totalorder %s130, %s131
      %p140 = scmp.eq.s32.totalorder %s45, 0
      %p141 = por %p139, %p140
      %p142 = scmp.ne.s32.totalorder %s130, %s131
      %p143 = scmp.eq.s32.totalorder %s46, 1
      %p144 = por %p142, %p143
      %p146 = scmp.ne.s32.totalorder %s131, %s145
      %p147 = scmp.eq.s32.totalorder %s46, 0
      %p148 = por %p146, %p147
      %s150 = sadd.s32 %s149, 1
      %p153 = scmp.eq.s32.totalorder %s40, 1
      %p154 = scmp.ne.s32.totalorder %s149, %s151
      %p155 = scmp.eq.s32.totalorder %s40, 0
      %p156 = por %p154, %p155
      %p157 = scmp.ne.s32.totalorder %s149, %s151
      %p158 = scmp.eq.s32.totalorder %s45, 1
      %p159 = por %p157, %p158
      %p160 = scmp.ne.s32.totalorder %s151, %s152
      %p161 = scmp.eq.s32.totalorder %s45, 0
      %p162 = por %p160, %p161
      %p163 = scmp.ne.s32.totalorder %s151, %s152
      %p164 = scmp.eq.s32.totalorder %s46, 1
      %p165 = por %p163, %p164
      %p167 = scmp.ne.s32.totalorder %s152, %s166
      %p168 = scmp.eq.s32.totalorder %s46, 0
      %p169 = por %p167, %p168
      %s171 = sadd.s32 %s170, 1
      %p174 = scmp.eq.s32.totalorder %s40, 1
      %p175 = scmp.ne.s32.totalorder %s170, %s172
      %p176 = scmp.eq.s32.totalorder %s40, 0
      %p177 = por %p175, %p176
      %p178 = scmp.ne.s32.totalorder %s170, %s172
      %p179 = scmp.eq.s32.totalorder %s45, 1
      %p180 = por %p178, %p179
      %p181 = scmp.ne.s32.totalorder %s172, %s173
      %p182 = scmp.eq.s32.totalorder %s45, 0
      %p183 = por %p181, %p182
      %p184 = scmp.ne.s32.totalorder %s172, %s173
      %p185 = scmp.eq.s32.totalorder %s46, 1
      %p186 = por %p184, %p185
      %p188 = scmp.ne.s32.totalorder %s173, %s187
      %p189 = scmp.eq.s32.totalorder %s46, 0
      %p190 = por %p188, %p189
      %s192 = sadd.s32 %s191, 1
      %p195 = scmp.eq.s32.totalorder %s40, 1
      %p196 = scmp.ne.s32.totalorder %s191, %s193
      %p197 = scmp.eq.s32.totalorder %s40, 0
      %p198 = por %p196, %p197
      %p199 = scmp.ne.s32.totalorder %s191, %s193
      %p200 = scmp.eq.s32.totalorder %s45, 1
      %p201 = por %p199, %p200
      %p202 = scmp.ne.s32.totalorder %s193, %s194
      %p203 = scmp.eq.s32.totalorder %s45, 0
      %p204 = por %p202, %p203
      %p205 = scmp.ne.s32.totalorder %s193, %s194
      %p206 = scmp.eq.s32.totalorder %s46, 1
      %p207 = por %p205, %p206
      %p209 = scmp.ne.s32.totalorder %s194, %s208
      %p210 = scmp.eq.s32.totalorder %s46, 0
      %p211 = por %p209, %p210
      %s213 = sadd.s32 %s212, 1
      %p216 = scmp.eq.s32.totalorder %s40, 1
      %p217 = scmp.ne.s32.totalorder %s212, %s214
      %p218 = scmp.eq.s32.totalorder %s40, 0
      %p219 = por %p217, %p218
      %p220 = scmp.ne.s32.totalorder %s212, %s214
      %p221 = scmp.eq.s32.totalorder %s45, 1
      %p222 = por %p220, %p221
      %p223 = scmp.ne.s32.totalorder %s214, %s215
      %p224 = scmp.eq.s32.totalorder %s45, 0
      %p225 = por %p223, %p224
      %p226 = scmp.ne.s32.totalorder %s214, %s215
      %p227 = scmp.eq.s32.totalorder %s46, 1
      %p228 = por %p226, %p227
      %p230 = scmp.ne.s32.totalorder %s215, %s229
      %p231 = scmp.eq.s32.totalorder %s46, 0
      %p232 = por %p230, %p231
      %s234 = sadd.s32 %s233, 1
      %p237 = scmp.eq.s32.totalorder %s40, 1
      %p238 = scmp.ne.s32.totalorder %s233, %s235
      %p239 = scmp.eq.s32.totalorder %s40, 0
      %p240 = por %p238, %p239
      %p241 = scmp.ne.s32.totalorder %s233, %s235
      %p242 = scmp.eq.s32.totalorder %s45, 1
      %p243 = por %p241, %p242
      %p244 = scmp.ne.s32.totalorder %s235, %s236
      %p245 = scmp.eq.s32.totalorder %s45, 0
      %p246 = por %p244, %p245
      %p247 = scmp.ne.s32.totalorder %s235, %s236
      %p248 = scmp.eq.s32.totalorder %s46, 1
      %p249 = por %p247, %p248
      %p251 = scmp.ne.s32.totalorder %s236, %s250
      %p252 = scmp.eq.s32.totalorder %s46, 0
      %p253 = por %p251, %p252
      %s255 = sadd.s32 %s254, 1
      %p258 = scmp.eq.s32.totalorder %s40, 1
      %p259 = scmp.ne.s32.totalorder %s254, %s256
      %p260 = scmp.eq.s32.totalorder %s40, 0
      %p261 = por %p259, %p260
      %p262 = scmp.ne.s32.totalorder %s254, %s256
      %p263 = scmp.eq.s32.totalorder %s45, 1
      %p264 = por %p262, %p263
      %p265 = scmp.ne.s32.totalorder %s256, %s257
      %p266 = scmp.eq.s32.totalorder %s45, 0
      %p267 = por %p265, %p266
      %p268 = scmp.ne.s32.totalorder %s256, %s257
      %p269 = scmp.eq.s32.totalorder %s46, 1
      %p270 = por %p268, %p269
      %p272 = scmp.ne.s32.totalorder %s257, %s271
      %p273 = scmp.eq.s32.totalorder %s46, 0
      %p274 = por %p272, %p273
      %s276 = sadd.s32 %s275, 1
      %p279 = scmp.eq.s32.totalorder %s40, 1
      %p280 = scmp.ne.s32.totalorder %s275, %s277
      %p281 = scmp.eq.s32.totalorder %s40, 0
      %p282 = por %p280, %p281
      %p283 = scmp.ne.s32.totalorder %s275, %s277
      %p284 = scmp.eq.s32.totalorder %s45, 1
      %p285 = por %p283, %p284
      %p286 = scmp.ne.s32.totalorder %s277, %s278
      %p287 = scmp.eq.s32.totalorder %s45, 0
      %p288 = por %p286, %p287
      %p289 = scmp.ne.s32.totalorder %s277, %s278
      %p290 = scmp.eq.s32.totalorder %s46, 1
      %p291 = por %p289, %p290
      %p293 = scmp.ne.s32.totalorder %s278, %s292
      %p294 = scmp.eq.s32.totalorder %s46, 0
      %p295 = por %p293, %p294
      %s297 = sadd.s32 %s296, 1
      %p300 = scmp.eq.s32.totalorder %s40, 1
      %p301 = scmp.ne.s32.totalorder %s296, %s298
      %p302 = scmp.eq.s32.totalorder %s40, 0
      %p303 = por %p301, %p302
      %p304 = scmp.ne.s32.totalorder %s296, %s298
      %p305 = scmp.eq.s32.totalorder %s45, 1
      %p306 = por %p304, %p305
      %p307 = scmp.ne.s32.totalorder %s298, %s299
      %p308 = scmp.eq.s32.totalorder %s45, 0
      %p309 = por %p307, %p308
      %p310 = scmp.ne.s32.totalorder %s298, %s299
      %p311 = scmp.eq.s32.totalorder %s46, 1
      %p312 = por %p310, %p311
      %p314 = scmp.ne.s32.totalorder %s299, %s313
      %p315 = scmp.eq.s32.totalorder %s46, 0
      %p316 = por %p314, %p315
      %s318 = sadd.s32 %s317, 1
      %p321 = scmp.eq.s32.totalorder %s40, 1
      %p322 = scmp.ne.s32.totalorder %s317, %s319
      %p323 = scmp.eq.s32.totalorder %s40, 0
      %p324 = por %p322, %p323
      %p325 = scmp.ne.s32.totalorder %s317, %s319
      %p326 = scmp.eq.s32.totalorder %s45, 1
      %p327 = por %p325, %p326
      %p328 = scmp.ne.s32.totalorder %s319, %s320
      %p329 = scmp.eq.s32.totalorder %s45, 0
      %p330 = por %p328, %p329
      %p331 = scmp.ne.s32.totalorder %s319, %s320
      %p332 = scmp.eq.s32.totalorder %s46, 1
      %p333 = por %p331, %p332
      %p335 = scmp.ne.s32.totalorder %s320, %s334
      %p336 = scmp.eq.s32.totalorder %s46, 0
      %p337 = por %p335, %p336
      %s338 = ssub.s32 %s47, %s59
      %s339 = ssub.s32 %s48, %s55
      %s340 = sor.u32 %s338, %s339
      %p341 = scmp.eq.s32.totalorder %s340, 0
      %s343 = sadd.s32 %s342, 1
      %s344 = scalar_select %p341, %s342, %s343
      %p347 = pneg %p341
      %p348 = scmp.eq.s32.totalorder %s40, 1
      %p349 = por %p347, %p348
      %p350 = scmp.ne.s32.totalorder %s342, %s345
      %p351 = scmp.eq.s32.totalorder %s40, 0
      %p352 = por %p350, %p351
      %p353 = scmp.ne.s32.totalorder %s342, %s345
      %p354 = scmp.eq.s32.totalorder %s45, 1
      %p355 = por %p353, %p354
      %p356 = scmp.ne.s32.totalorder %s345, %s346
      %p357 = scmp.eq.s32.totalorder %s45, 0
      %p358 = por %p356, %p357
      %p359 = scmp.ne.s32.totalorder %s345, %s346
      %p360 = scmp.eq.s32.totalorder %s46, 1
      %p361 = por %p359, %p360
      %p363 = scmp.ne.s32.totalorder %s346, %s362
      %p364 = scmp.eq.s32.totalorder %s46, 0
      %p365 = por %p363, %p364
      %s366 = ssub.s32 %s47, %s59
      %s367 = ssub.s32 %s48, %s55
      %s368 = sor.u32 %s366, %s367
      %p369 = scmp.eq.s32.totalorder %s368, 0
      %s371 = sadd.s32 %s370, 1
      %s372 = scalar_select %p369, %s370, %s371
      %p375 = pneg %p369
      %p376 = scmp.eq.s32.totalorder %s40, 1
      %p377 = por %p375, %p376
      %p378 = scmp.ne.s32.totalorder %s370, %s373
      %p379 = scmp.eq.s32.totalorder %s40, 0
      %p380 = por %p378, %p379
      %p381 = scmp.ne.s32.totalorder %s370, %s373
      %p382 = scmp.eq.s32.totalorder %s45, 1
      %p383 = por %p381, %p382
      %p384 = scmp.ne.s32.totalorder %s373, %s374
      %p385 = scmp.eq.s32.totalorder %s45, 0
      %p386 = por %p384, %p385
      %p387 = scmp.ne.s32.totalorder %s373, %s374
      %p388 = scmp.eq.s32.totalorder %s46, 1
      %p389 = por %p387, %p388
      %p391 = scmp.ne.s32.totalorder %s374, %s390
      %p392 = scmp.eq.s32.totalorder %s46, 0
      %p393 = por %p391, %p392
      %s394 = ssub.s32 %s47, %s59
      %s395 = ssub.s32 %s48, %s55
      %s396 = sor.u32 %s394, %s395
      %p397 = scmp.eq.s32.totalorder %s396, 0
      %s399 = sadd.s32 %s398, 1
      %s400 = scalar_select %p397, %s398, %s399
      %p403 = pneg %p397
      %p404 = scmp.eq.s32.totalorder %s40, 1
      %p405 = por %p403, %p404
      %p406 = scmp.ne.s32.totalorder %s398, %s401
      %p407 = scmp.eq.s32.totalorder %s40, 0
      %p408 = por %p406, %p407
      %p409 = scmp.ne.s32.totalorder %s398, %s401
      %p410 = scmp.eq.s32.totalorder %s45, 1
      %p411 = por %p409, %p410
      %p412 = scmp.ne.s32.totalorder %s401, %s402
      %p413 = scmp.eq.s32.totalorder %s45, 0
      %p414 = por %p412, %p413
      %p415 = scmp.ne.s32.totalorder %s401, %s402
      %p416 = scmp.eq.s32.totalorder %s46, 1
      %p417 = por %p415, %p416
      %p419 = scmp.ne.s32.totalorder %s402, %s418
      %p420 = scmp.eq.s32.totalorder %s46, 0
      %p421 = por %p419, %p420
      %p422 = scmp.le.s32.totalorder 1, %s40
      %p423 = scmp.lt.s32.totalorder %s40, 3
      %p424 = pnand %p422, %p423
      %p425 = pneg %p424
      // Predicated region
      $region9: #{tpu_custom_call.1} parent=5 // pred_check
        _
      $region10: #{tpu_custom_call.1} parent=5 // pred_check_branch
        %427 = sbr.rel (%p424) target = $region12
      $region11: #{tpu_custom_call.1} parent=5 // pred_region
        %s428 = ssub.s32 %s40, 1
        // Predicated region
        $region13: #{tpu_custom_call.1} parent=11 // pred_check
          %p429 = pneg %p99
        $region14: #{tpu_custom_call.1} parent=11 // pred_check_branch
          %431 = sbr.rel (%p429) target = $region16
        $region15: #{tpu_custom_call.1} parent=11 // pred_region
          %s433 = ssub.s32 2048, 2048
          %434 = vsyncadd [#allocation10], %s433
          %s435 = sshll.u32 [#allocation9], 4
          %s436 = int_to_ptr.vmem [resolvable:$true] %s435
          %441 = dma.hbm_to_vmem [thread:$0]  %s2, 2048, %s436, [#allocation10], 128, 128, 8
        $region16: #{tpu_custom_call.1} parent=11 // pred_fallthru
          _
        // Predicated region
        $region17: #{tpu_custom_call.1} parent=11 // pred_check
          %p442 = pneg %p120
        $region18: #{tpu_custom_call.1} parent=11 // pred_check_branch
          %444 = sbr.rel (%p442) target = $region20
        $region19: #{tpu_custom_call.1} parent=11 // pred_region
          _
        $region20: #{tpu_custom_call.1} parent=11 // pred_fallthru
          _
        // Predicated region
        $region21: #{tpu_custom_call.1} parent=11 // pred_check
          %p445 = pneg %p141
        $region22: #{tpu_custom_call.1} parent=11 // pred_check_branch
          %447 = sbr.rel (%p445) target = $region24
        $region23: #{tpu_custom_call.1} parent=11 // pred_region
          %s449 = ssub.s32 4096, 4096
          %450 = vsyncadd [#allocation13], %s449
          %s451 = sshll.u32 [#allocation12], 4
          %s452 = int_to_ptr.vmem [resolvable:$true] %s451
          %457 = dma.hbm_to_vmem [thread:$0]  %s4, 4096, %s452, [#allocation13], 128, 128, 8
        $region24: #{tpu_custom_call.1} parent=11 // pred_fallthru
          _
        // Predicated region
        $region25: #{tpu_custom_call.1} parent=11 // pred_check
          %p458 = pneg %p162
        $region26: #{tpu_custom_call.1} parent=11 // pred_check_branch
          %460 = sbr.rel (%p458) target = $region28
        $region27: #{tpu_custom_call.1} parent=11 // pred_region
          _
        $region28: #{tpu_custom_call.1} parent=11 // pred_fallthru
          _
        // Predicated region
        $region29: #{tpu_custom_call.1} parent=11 // pred_check
          %p461 = pneg %p183
        $region30: #{tpu_custom_call.1} parent=11 // pred_check_branch
          %463 = sbr.rel (%p461) target = $region32
        $region31: #{tpu_custom_call.1} parent=11 // pred_region
          _
        $region32: #{tpu_custom_call.1} parent=11 // pred_fallthru
          _
        // Predicated region
        $region33: #{tpu_custom_call.1} parent=11 // pred_check
          %p464 = pneg %p204
        $region34: #{tpu_custom_call.1} parent=11 // pred_check_branch
          %466 = sbr.rel (%p464) target = $region36
        $region35: #{tpu_custom_call.1} parent=11 // pred_region
          _
        $region36: #{tpu_custom_call.1} parent=11 // pred_fallthru
          _
        // Predicated region
        $region37: #{tpu_custom_call.1} parent=11 // pred_check
          %p467 = pneg %p225
        $region38: #{tpu_custom_call.1} parent=11 // pred_check_branch
          %469 = sbr.rel (%p467) target = $region40
        $region39: #{tpu_custom_call.1} parent=11 // pred_region
          %s471 = ssub.s32 6144, 6144
          %472 = vsyncadd [#allocation13], %s471
          %s473 = sshll.u32 [#allocation14], 4
          %s474 = int_to_ptr.vmem [resolvable:$true] %s473
          %479 = dma.hbm_to_vmem [thread:$0]  %s8, 6144, %s474, [#allocation13], 128, 128, 8
        $region40: #{tpu_custom_call.1} parent=11 // pred_fallthru
          _
        // Predicated region
        $region41: #{tpu_custom_call.1} parent=11 // pred_check
          %p480 = pneg %p246
        $region42: #{tpu_custom_call.1} parent=11 // pred_check_branch
          %482 = sbr.rel (%p480) target = $region44
        $region43: #{tpu_custom_call.1} parent=11 // pred_region
          _
        $region44: #{tpu_custom_call.1} parent=11 // pred_fallthru
          _
        // Predicated region
        $region45: #{tpu_custom_call.1} parent=11 // pred_check
          %p483 = pneg %p267
        $region46: #{tpu_custom_call.1} parent=11 // pred_check_branch
          %485 = sbr.rel (%p483) target = $region48
        $region47: #{tpu_custom_call.1} parent=11 // pred_region
          %s487 = ssub.s32 4096, 4096
          %488 = vsyncadd [#allocation16], %s487
          %s489 = sshll.u32 [#allocation15], 4
          %s490 = int_to_ptr.vmem [resolvable:$true] %s489
          %495 = dma.hbm_to_vmem [thread:$0]  %s10, 4096, %s490, [#allocation16], 128, 128, 8
        $region48: #{tpu_custom_call.1} parent=11 // pred_fallthru
          _
        // Predicated region
        $region49: #{tpu_custom_call.1} parent=11 // pred_check
          %p496 = pneg %p288
        $region50: #{tpu_custom_call.1} parent=11 // pred_check_branch
          %498 = sbr.rel (%p496) target = $region52
        $region51: #{tpu_custom_call.1} parent=11 // pred_region
          _
        $region52: #{tpu_custom_call.1} parent=11 // pred_fallthru
          _
        // Predicated region
        $region53: #{tpu_custom_call.1} parent=11 // pred_check
          %p499 = pneg %p309
        $region54: #{tpu_custom_call.1} parent=11 // pred_check_branch
          %501 = sbr.rel (%p499) target = $region56
        $region55: #{tpu_custom_call.1} parent=11 // pred_region
          _
        $region56: #{tpu_custom_call.1} parent=11 // pred_fallthru
          _
        // Predicated region
        $region57: #{tpu_custom_call.1} parent=11 // pred_check
          %p502 = pneg %p330
        $region58: #{tpu_custom_call.1} parent=11 // pred_check_branch
          %504 = sbr.rel (%p502) target = $region60
        $region59: #{tpu_custom_call.1} parent=11 // pred_region
          _
        $region60: #{tpu_custom_call.1} parent=11 // pred_fallthru
          _
      $region12: #{tpu_custom_call.1} parent=5 // pred_fallthru
        _
      %p505 = scmp.lt.s32.totalorder %s40, 2
      // Predicated region
      $region61: #{tpu_custom_call.1} parent=5 // pred_check
        %p506 = pneg %p505
      $region62: #{tpu_custom_call.1} parent=5 // pred_check_branch
        %508 = sbr.rel (%p506) target = $region64
      $region63: #{tpu_custom_call.1} parent=5 // pred_region
        // Predicated region
        $region65: #{tpu_custom_call.1} parent=63 // pred_check
          %p509 = pneg %p72
        $region66: #{tpu_custom_call.1} parent=63 // pred_check_branch
          %511 = sbr.rel (%p509) target = $region68
        $region67: #{tpu_custom_call.1} parent=63 // pred_region
          %p512 = scmp.lt.s32.totalorder %s47, 1
          %s513 = scalar_select %p512, %s47, 1
          %s514 = smul.addr %s513, 2
          %s515 = smul.addr %s514, 4
          %s516 = scalar_lea.vmem %s1, %s515
        $region68: #{tpu_custom_call.1} parent=63 // pred_fallthru
          _
        // Predicated region
        $region69: #{tpu_custom_call.1} parent=63 // pred_check
          %p517 = pneg %p352
        $region70: #{tpu_custom_call.1} parent=63 // pred_check_branch
          %519 = sbr.rel (%p517) target = $region72
        $region71: #{tpu_custom_call.1} parent=63 // pred_region
          %p520 = scmp.lt.s32.totalorder %s47, 1
          %s521 = scalar_select %p520, %s47, 1
          %p522 = scmp.lt.s32.totalorder %s48, 0
          %s523 = scalar_select %p522, %s48, 0
          %s524 = sadd.s32 %s523, %s521
          %s525 = smul.addr %s524, 8
          %s526 = scalar_lea.vmem %s14, %s525
        $region72: #{tpu_custom_call.1} parent=63 // pred_fallthru
          _
      $region64: #{tpu_custom_call.1} parent=5 // pred_fallthru
        _
      %p527 = scmp.le.s32.totalorder 1, %s40
      %p528 = scmp.lt.s32.totalorder %s40, 3
      %p529 = pnand %p527, %p528
      %p530 = pneg %p529
      // Predicated region
      $region73: #{tpu_custom_call.1} parent=5 // pred_check
        _
      $region74: #{tpu_custom_call.1} parent=5 // pred_check_branch
        %532 = sbr.rel (%p529) target = $region76
      $region75: #{tpu_custom_call.1} parent=5 // pred_region
        %s533 = ssub.s32 %s40, 1
        // Predicated region
        $region77: #{tpu_custom_call.1} parent=75 // pred_check
          %p534 = pneg %p99
        $region78: #{tpu_custom_call.1} parent=75 // pred_check_branch
          %536 = sbr.rel (%p534) target = $region80
        $region79: #{tpu_custom_call.1} parent=75 // pred_region
          %537 = dma.done [#allocation10], 2048
        $region80: #{tpu_custom_call.1} parent=75 // pred_fallthru
          _
        // Predicated region
        $region81: #{tpu_custom_call.1} parent=75 // pred_check
          %p538 = pneg %p141
        $region82: #{tpu_custom_call.1} parent=75 // pred_check_branch
          %540 = sbr.rel (%p538) target = $region84
        $region83: #{tpu_custom_call.1} parent=75 // pred_region
          %541 = dma.done [#allocation13], 4096
        $region84: #{tpu_custom_call.1} parent=75 // pred_fallthru
          _
        // Predicated region
        $region85: #{tpu_custom_call.1} parent=75 // pred_check
          %p542 = pneg %p225
        $region86: #{tpu_custom_call.1} parent=75 // pred_check_branch
          %544 = sbr.rel (%p542) target = $region88
        $region87: #{tpu_custom_call.1} parent=75 // pred_region
          %545 = dma.done [#allocation13], 6144
        $region88: #{tpu_custom_call.1} parent=75 // pred_fallthru
          _
        // Predicated region
        $region89: #{tpu_custom_call.1} parent=75 // pred_check
          %p546 = pneg %p267
        $region90: #{tpu_custom_call.1} parent=75 // pred_check_branch
          %548 = sbr.rel (%p546) target = $region92
        $region91: #{tpu_custom_call.1} parent=75 // pred_region
          %549 = dma.done [#allocation16], 4096
        $region92: #{tpu_custom_call.1} parent=75 // pred_fallthru
          _
        %p550 = scmp.lt.s32.totalorder %s49, 1
        %s551 = scalar_select %p550, %s49, 1
        %s552 = smul.addr %s551, 2
        %s553 = smul.addr %s552, 4
        %s554 = scalar_lea.vmem %s1, %s553
        %p555 = pneg %p78
        %p556 = pneg %p75
        %p557 = pneg %p99
        %p558 = pneg %p96
        %p559 = pneg %p120
        %p560 = pneg %p117
        %p561 = pneg %p141
        %p562 = pneg %p138
        %p563 = pneg %p162
        %p564 = pneg %p159
        %p565 = pneg %p183
        %p566 = pneg %p180
        %p567 = pneg %p204
        %p568 = pneg %p201
        %p569 = pneg %p225
        %p570 = pneg %p222
        %p571 = pneg %p246
        %p572 = pneg %p243
        %p573 = pneg %p267
        %p574 = pneg %p264
        %p575 = pneg %p288
        %p576 = pneg %p285
        %p577 = pneg %p309
        %p578 = pneg %p306
        %p579 = pneg %p330
        %p580 = pneg %p327
        %p581 = scmp.lt.s32.totalorder %s49, 1
        %s582 = scalar_select %p581, %s49, 1
        %p583 = scmp.lt.s32.totalorder %s50, 0
        %s584 = scalar_select %p583, %s50, 0
        %s585 = sadd.s32 %s584, %s582
        %s586 = smul.addr %s585, 8
        %s587 = scalar_lea.vmem %s14, %s586
        %p588 = pneg %p358
        %p589 = pneg %p355
        %p590 = pneg %p386
        %p591 = pneg %p383
        %s592 = sand.u32 %s373, 1
        %s593 = scalar_lea.sflag [#allocation11], %s592
        %s594 = sand.u32 %s373, 1
        %s595 = smul.addr %s594, 24
        %s596 = scalar_lea.vmem [#allocation17], %s595
        %p597 = pneg %p414
        %p598 = pneg %p411
        %s599 = sand.u32 %s401, 1
        %s600 = scalar_lea.sflag [#allocation19], %s599
        %s601 = sand.u32 %s401, 1
        %s602 = scalar_lea.vmem [#allocation18], %s601
        %p603 = scmp.lt.s32.totalorder %s49, 1
        %s604 = scalar_select %p603, %s49, 1
        %s605 = smul.addr %s604, 2
        %s606 = smul.addr %s605, 4
        %s607 = scalar_lea.vmem %s1, %s606
        %p608 = scmp.lt.s32.totalorder %s49, 1
        %s609 = scalar_select %p608, %s49, 1
        %p610 = scmp.lt.s32.totalorder %s50, 0
        %s611 = scalar_select %p610, %s50, 0
        %s612 = sadd.s32 %s611, %s609
        %s613 = smul.addr %s612, 8
        %s614 = scalar_lea.vmem %s14, %s613
        %p616 = scmp.eq.s32.totalorder %s50, 0
        // Predicated region
        $region93: #{tpu_custom_call.1} parent=75 // pred_check
          %p617 = pneg %p616
        $region94: #{tpu_custom_call.1} parent=75 // pred_check_branch
          %619 = sbr.rel (%p617) target = $region96
        $region95: #{tpu_custom_call.1} parent=75 // pred_region
          %v620 = vld [vmem:[%s607] sm:$0xf]
          %v621 = vld [vmem:[%s607 + $0x4] sm:$0xf]
          %v622 = vld [vmem:[#allocation9] sm:$0xff]
          %v623 = vld [vmem:[#allocation9 + $0x8] sm:$0xff]
          %v624 = vld [vmem:[#allocation9 + $0x10] sm:$0xff]
          %v625 = vld [vmem:[#allocation9 + $0x18] sm:$0xff]
          %v626 = vld [vmem:[#allocation9 + $0x20] sm:$0xff]
          %v627 = vld [vmem:[#allocation9 + $0x28] sm:$0xff]
          %v628 = vld [vmem:[#allocation9 + $0x30] sm:$0xff]
          %v629 = vld [vmem:[#allocation9 + $0x38] sm:$0xff]
          %v630 = vld [vmem:[#allocation9 + $0x40] sm:$0xff]
          %v631 = vld [vmem:[#allocation9 + $0x48] sm:$0xff]
          %v632 = vld [vmem:[#allocation9 + $0x50] sm:$0xff]
          %v633 = vld [vmem:[#allocation9 + $0x58] sm:$0xff]
          %v634 = vld [vmem:[#allocation9 + $0x60] sm:$0xff]
          %v635 = vld [vmem:[#allocation9 + $0x68] sm:$0xff]
          %v636 = vld [vmem:[#allocation9 + $0x70] sm:$0xff]
          %v637 = vld [vmem:[#allocation9 + $0x78] sm:$0xff]
          %v638 = vld [vmem:[%s3] sm:$0x3]
          %v640 = vlaneseq
          %v641 = vshrl.u32 %v640, 7
          %v642 = vsub.s32 0, %v641
          %v643 = vrot.slane %v638, %v642
          %v644 = vlaneseq
          %v645 = vshrl.u32 %v644, 7
          %v646 = vsub.s32 1, %v645
          %v647 = vrot.slane %v638, %v646
          %v652 = vunpack.c.l.b16 %v620
          %v653 = vunpack.c.l.b16 %v621
          %v654 = vpack.c.b16 %v653, %v652
          %v672 = vunpack.c.l.b16 %v622
          %v673 = vunpack.c.h.b16 %v622
          %v674 = vunpack.c.l.b16 %v623
          %v675 = vunpack.c.h.b16 %v623
          %v676 = vunpack.c.l.b16 %v624
          %v677 = vunpack.c.h.b16 %v624
          %v678 = vunpack.c.l.b16 %v625
          %v679 = vunpack.c.h.b16 %v625
          %v680 = vunpack.c.l.b16 %v626
          %v681 = vunpack.c.h.b16 %v626
          %v682 = vunpack.c.l.b16 %v627
          %v683 = vunpack.c.h.b16 %v627
          %v684 = vunpack.c.l.b16 %v628
          %v685 = vunpack.c.h.b16 %v628
          %v686 = vunpack.c.l.b16 %v629
          %v687 = vunpack.c.h.b16 %v629
          %v688 = vunpack.c.l.b16 %v630
          %v689 = vunpack.c.h.b16 %v630
          %v690 = vunpack.c.l.b16 %v631
          %v691 = vunpack.c.h.b16 %v631
          %v692 = vunpack.c.l.b16 %v632
          %v693 = vunpack.c.h.b16 %v632
          %v694 = vunpack.c.l.b16 %v633
          %v695 = vunpack.c.h.b16 %v633
          %v696 = vunpack.c.l.b16 %v634
          %v697 = vunpack.c.h.b16 %v634
          %v698 = vunpack.c.l.b16 %v635
          %v699 = vunpack.c.h.b16 %v635
          %v700 = vunpack.c.l.b16 %v636
          %v701 = vunpack.c.h.b16 %v636
          %v702 = vunpack.c.l.b16 %v637
          %v703 = vunpack.c.h.b16 %v637
          %v704 = vpack.c.b16 %v674, %v672
          %v705 = vpack.c.b16 %v675, %v673
          %v706 = vpack.c.b16 %v678, %v676
          %v707 = vpack.c.b16 %v679, %v677
          %v708 = vpack.c.b16 %v682, %v680
          %v709 = vpack.c.b16 %v683, %v681
          %v710 = vpack.c.b16 %v686, %v684
          %v711 = vpack.c.b16 %v687, %v685
          %v712 = vpack.c.b16 %v690, %v688
          %v713 = vpack.c.b16 %v691, %v689
          %v714 = vpack.c.b16 %v694, %v692
          %v715 = vpack.c.b16 %v695, %v693
          %v716 = vpack.c.b16 %v698, %v696
          %v717 = vpack.c.b16 %v699, %v697
          %v718 = vpack.c.b16 %v702, %v700
          %v719 = vpack.c.b16 %v703, %v701
          %736 = vmatprep.subr.bf16.mxu0 %v705
          %737 = vmatpush1.bf16.msra.mxu0 %v704
          %738 = vmatprep.subr.bf16.mxu0 %v707
          %739 = vmatpush1.bf16.msra.mxu0 %v706
          %740 = vmatprep.subr.bf16.mxu0 %v709
          %741 = vmatpush1.bf16.msra.mxu0 %v708
          %742 = vmatprep.subr.bf16.mxu0 %v711
          %743 = vmatpush1.bf16.msra.mxu0 %v710
          %744 = vmatprep.subr.bf16.mxu0 %v713
          %745 = vmatpush1.bf16.msra.mxu0 %v712
          %746 = vmatprep.subr.bf16.mxu0 %v715
          %747 = vmatpush1.bf16.msra.mxu0 %v714
          %748 = vmatprep.subr.bf16.mxu0 %v717
          %749 = vmatpush1.bf16.msra.mxu0 %v716
          %750 = vmatprep.subr.bf16.mxu0 %v719
          %751 = vmatpush1.bf16.msra.mxu0 %v718
          %752 = vmatprep.subr.bf16.mxu0 0
          %753 = vmatpush1.bf16.msra.mxu0 0
          %754 = vmatprep.subr.bf16.mxu0 0
          %755 = vmatpush1.bf16.msra.mxu0 0
          %756 = vmatprep.subr.bf16.mxu0 0
          %757 = vmatpush1.bf16.msra.mxu0 0
          %758 = vmatprep.subr.bf16.mxu0 0
          %759 = vmatpush1.bf16.msra.mxu0 0
          %760 = vmatprep.subr.bf16.mxu0 0
          %761 = vmatpush1.bf16.msra.mxu0 0
          %762 = vmatprep.subr.bf16.mxu0 0
          %763 = vmatpush1.bf16.msra.mxu0 0
          %764 = vmatprep.subr.bf16.mxu0 0
          %765 = vmatpush1.bf16.msra.mxu0 0
          %766 = vmatprep.subr.bf16.mxu0 0
          %767 = vmatpush1.bf16.msra.mxu0 0
          %768 = vmatprep.mubr.bf16.mxu0 0
          %769 = vmatmul.mubr.bf16.gmra.mrb[0].mxu0 %v654
          %v770 = vpop.f32.mrb[0].mxu0
          %v771 = vadd.f32 %v643, %v770
          %v772 = vpop.f32.mrb[0].mxu0
          %v773 = vadd.f32 %v647, %v772
          %v774 = vpop.f32.mrb[0].mxu0
          %v775 = vadd.f32 %v643, %v774
          %v776 = vpop.f32.mrb[0].mxu0
          %v777 = vadd.f32 %v647, %v776
          %778 = vdwg.mxu0
          %v779 = vmax.f32 %v771, 0.0
          %v780 = vmax.f32 %v773, 0.0
          %v781 = vmax.f32 %v775, 0.0
          %v782 = vmax.f32 %v777, 0.0
          %v783 = vpack.c.bf16 %v781, %v779
          %v784 = vpack.c.bf16 %v782, %v780
          %v785 = vld [vmem:[#allocation12] sm:$0xff]
          %v786 = vld [vmem:[#allocation12 + $0x8] sm:$0xff]
          %v787 = vld [vmem:[#allocation12 + $0x10] sm:$0xff]
          %v788 = vld [vmem:[#allocation12 + $0x18] sm:$0xff]
          %v789 = vld [vmem:[#allocation12 + $0x20] sm:$0xff]
          %v790 = vld [vmem:[#allocation12 + $0x28] sm:$0xff]
          %v791 = vld [vmem:[#allocation12 + $0x30] sm:$0xff]
          %v792 = vld [vmem:[#allocation12 + $0x38] sm:$0xff]
          %v793 = vld [vmem:[#allocation12 + $0x40] sm:$0xff]
          %v794 = vld [vmem:[#allocation12 + $0x48] sm:$0xff]
          %v795 = vld [vmem:[#allocation12 + $0x50] sm:$0xff]
          %v796 = vld [vmem:[#allocation12 + $0x58] sm:$0xff]
          %v797 = vld [vmem:[#allocation12 + $0x60] sm:$0xff]
          %v798 = vld [vmem:[#allocation12 + $0x68] sm:$0xff]
          %v799 = vld [vmem:[#allocation12 + $0x70] sm:$0xff]
          %v800 = vld [vmem:[#allocation12 + $0x78] sm:$0xff]
          %v801 = vld [vmem:[#allocation12 + $0x80] sm:$0xff]
          %v802 = vld [vmem:[#allocation12 + $0x88] sm:$0xff]
          %v803 = vld [vmem:[#allocation12 + $0x90] sm:$0xff]
          %v804 = vld [vmem:[#allocation12 + $0x98] sm:$0xff]
          %v805 = vld [vmem:[#allocation12 + $0xa0] sm:$0xff]
          %v806 = vld [vmem:[#allocation12 + $0xa8] sm:$0xff]
          %v807 = vld [vmem:[#allocation12 + $0xb0] sm:$0xff]
          %v808 = vld [vmem:[#allocation12 + $0xb8] sm:$0xff]
          %v809 = vld [vmem:[#allocation12 + $0xc0] sm:$0xff]
          %v810 = vld [vmem:[#allocation12 + $0xc8] sm:$0xff]
          %v811 = vld [vmem:[#allocation12 + $0xd0] sm:$0xff]
          %v812 = vld [vmem:[#allocation12 + $0xd8] sm:$0xff]
          %v813 = vld [vmem:[#allocation12 + $0xe0] sm:$0xff]
          %v814 = vld [vmem:[#allocation12 + $0xe8] sm:$0xff]
          %v815 = vld [vmem:[#allocation12 + $0xf0] sm:$0xff]
          %v816 = vld [vmem:[#allocation12 + $0xf8] sm:$0xff]
          %v817 = vld [vmem:[%s5] sm:$0x3]
          %v819 = vlaneseq
          %v820 = vshrl.u32 %v819, 7
          %v821 = vsub.s32 0, %v820
          %v822 = vrot.slane %v817, %v821
          %v823 = vlaneseq
          %v824 = vshrl.u32 %v823, 7
          %v825 = vsub.s32 1, %v824
          %v826 = vrot.slane %v817, %v825
          %v861 = vunpack.c.l.b16 %v785
          %v862 = vunpack.c.h.b16 %v785
          %v863 = vunpack.c.l.b16 %v786
          %v864 = vunpack.c.h.b16 %v786
          %v865 = vunpack.c.l.b16 %v787
          %v866 = vunpack.c.h.b16 %v787
          %v867 = vunpack.c.l.b16 %v788
          %v868 = vunpack.c.h.b16 %v788
          %v869 = vunpack.c.l.b16 %v789
          %v870 = vunpack.c.h.b16 %v789
          %v871 = vunpack.c.l.b16 %v790
          %v872 = vunpack.c.h.b16 %v790
          %v873 = vunpack.c.l.b16 %v791
          %v874 = vunpack.c.h.b16 %v791
          %v875 = vunpack.c.l.b16 %v792
          %v876 = vunpack.c.h.b16 %v792
          %v877 = vunpack.c.l.b16 %v793
          %v878 = vunpack.c.h.b16 %v793
          %v879 = vunpack.c.l.b16 %v794
          %v880 = vunpack.c.h.b16 %v794
          %v881 = vunpack.c.l.b16 %v795
          %v882 = vunpack.c.h.b16 %v795
          %v883 = vunpack.c.l.b16 %v796
          %v884 = vunpack.c.h.b16 %v796
          %v885 = vunpack.c.l.b16 %v797
          %v886 = vunpack.c.h.b16 %v797
          %v887 = vunpack.c.l.b16 %v798
          %v888 = vunpack.c.h.b16 %v798
          %v889 = vunpack.c.l.b16 %v799
          %v890 = vunpack.c.h.b16 %v799
          %v891 = vunpack.c.l.b16 %v800
          %v892 = vunpack.c.h.b16 %v800
          %v893 = vunpack.c.l.b16 %v801
          %v894 = vunpack.c.h.b16 %v801
          %v895 = vunpack.c.l.b16 %v802
          %v896 = vunpack.c.h.b16 %v802
          %v897 = vunpack.c.l.b16 %v803
          %v898 = vunpack.c.h.b16 %v803
          %v899 = vunpack.c.l.b16 %v804
          %v900 = vunpack.c.h.b16 %v804
          %v901 = vunpack.c.l.b16 %v805
          %v902 = vunpack.c.h.b16 %v805
          %v903 = vunpack.c.l.b16 %v806
          %v904 = vunpack.c.h.b16 %v806
          %v905 = vunpack.c.l.b16 %v807
          %v906 = vunpack.c.h.b16 %v807
          %v907 = vunpack.c.l.b16 %v808
          %v908 = vunpack.c.h.b16 %v808
          %v909 = vunpack.c.l.b16 %v809
          %v910 = vunpack.c.h.b16 %v809
          %v911 = vunpack.c.l.b16 %v810
          %v912 = vunpack.c.h.b16 %v810
          %v913 = vunpack.c.l.b16 %v811
          %v914 = vunpack.c.h.b16 %v811
          %v915 = vunpack.c.l.b16 %v812
          %v916 = vunpack.c.h.b16 %v812
          %v917 = vunpack.c.l.b16 %v813
          %v918 = vunpack.c.h.b16 %v813
          %v919 = vunpack.c.l.b16 %v814
          %v920 = vunpack.c.h.b16 %v814
          %v921 = vunpack.c.l.b16 %v815
          %v922 = vunpack.c.h.b16 %v815
          %v923 = vunpack.c.l.b16 %v816
          %v924 = vunpack.c.h.b16 %v816
          %v925 = vpack.c.b16 %v863, %v861
          %v926 = vpack.c.b16 %v864, %v862
          %v927 = vpack.c.b16 %v867, %v865
          %v928 = vpack.c.b16 %v868, %v866
          %v929 = vpack.c.b16 %v871, %v869
          %v930 = vpack.c.b16 %v872, %v870
          %v931 = vpack.c.b16 %v875, %v873
          %v932 = vpack.c.b16 %v876, %v874
          %v933 = vpack.c.b16 %v879, %v877
          %v934 = vpack.c.b16 %v880, %v878
          %v935 = vpack.c.b16 %v883, %v881
          %v936 = vpack.c.b16 %v884, %v882
          %v937 = vpack.c.b16 %v887, %v885
          %v938 = vpack.c.b16 %v888, %v886
          %v939 = vpack.c.b16 %v891, %v889
          %v940 = vpack.c.b16 %v892, %v890
          %v941 = vpack.c.b16 %v895, %v893
          %v942 = vpack.c.b16 %v896, %v894
          %v943 = vpack.c.b16 %v899, %v897
          %v944 = vpack.c.b16 %v900, %v898
          %v945 = vpack.c.b16 %v903, %v901
          %v946 = vpack.c.b16 %v904, %v902
          %v947 = vpack.c.b16 %v907, %v905
          %v948 = vpack.c.b16 %v908, %v906
          %v949 = vpack.c.b16 %v911, %v909
          %v950 = vpack.c.b16 %v912, %v910
          %v951 = vpack.c.b16 %v915, %v913
          %v952 = vpack.c.b16 %v916, %v914
          %v953 = vpack.c.b16 %v919, %v917
          %v954 = vpack.c.b16 %v920, %v918
          %v955 = vpack.c.b16 %v923, %v921
          %v956 = vpack.c.b16 %v924, %v922
          %989 = vmatprep.subr.bf16.mxu0 %v926
          %990 = vmatpush1.bf16.msra.mxu0 %v925
          %991 = vmatprep.subr.bf16.mxu0 %v928
          %992 = vmatpush1.bf16.msra.mxu0 %v927
          %993 = vmatprep.subr.bf16.mxu0 %v930
          %994 = vmatpush1.bf16.msra.mxu0 %v929
          %995 = vmatprep.subr.bf16.mxu0 %v932
          %996 = vmatpush1.bf16.msra.mxu0 %v931
          %997 = vmatprep.subr.bf16.mxu0 %v934
          %998 = vmatpush1.bf16.msra.mxu0 %v933
          %999 = vmatprep.subr.bf16.mxu0 %v936
          %1000 = vmatpush1.bf16.msra.mxu0 %v935
          %1001 = vmatprep.subr.bf16.mxu0 %v938
          %1002 = vmatpush1.bf16.msra.mxu0 %v937
          %1003 = vmatprep.subr.bf16.mxu0 %v940
          %1004 = vmatpush1.bf16.msra.mxu0 %v939
          %1005 = vmatprep.subr.bf16.mxu0 %v942
          %1006 = vmatpush1.bf16.msra.mxu0 %v941
          %1007 = vmatprep.subr.bf16.mxu0 %v944
          %1008 = vmatpush1.bf16.msra.mxu0 %v943
          %1009 = vmatprep.subr.bf16.mxu0 %v946
          %1010 = vmatpush1.bf16.msra.mxu0 %v945
          %1011 = vmatprep.subr.bf16.mxu0 %v948
          %1012 = vmatpush1.bf16.msra.mxu0 %v947
          %1013 = vmatprep.subr.bf16.mxu0 %v950
          %1014 = vmatpush1.bf16.msra.mxu0 %v949
          %1015 = vmatprep.subr.bf16.mxu0 %v952
          %1016 = vmatpush1.bf16.msra.mxu0 %v951
          %1017 = vmatprep.subr.bf16.mxu0 %v954
          %1018 = vmatpush1.bf16.msra.mxu0 %v953
          %1019 = vmatprep.subr.bf16.mxu0 %v956
          %1020 = vmatpush1.bf16.msra.mxu0 %v955
          %1021 = vmatprep.mubr.bf16.mxu0 %v784
          %1022 = vmatmul.mubr.bf16.gmra.mrb[0].mxu0 %v783
          %v1023 = vpop.f32.mrb[0].mxu0
          %v1024 = vadd.f32 %v822, %v1023
          %v1025 = vpop.f32.mrb[0].mxu0
          %v1026 = vadd.f32 %v826, %v1025
          %v1027 = vpop.f32.mrb[0].mxu0
          %v1028 = vadd.f32 %v822, %v1027
          %v1029 = vpop.f32.mrb[0].mxu0
          %v1030 = vadd.f32 %v826, %v1029
          %1031 = vdwg.mxu0
          %v1032 = vmax.f32 %v1024, 0.0
          %v1033 = vmax.f32 %v1026, 0.0
          %v1034 = vmax.f32 %v1028, 0.0
          %v1035 = vmax.f32 %v1030, 0.0
          %v1036 = vld [vmem:[%s6] sm:$0x3]
          %v1038 = vlaneseq
          %v1039 = vshrl.u32 %v1038, 7
          %v1040 = vsub.s32 0, %v1039
          %v1041 = vrot.slane %v1036, %v1040
          %v1042 = vlaneseq
          %v1043 = vshrl.u32 %v1042, 7
          %v1044 = vsub.s32 1, %v1043
          %v1045 = vrot.slane %v1036, %v1044
          %v1048 = vmul.f32 %v1032, %v1041
          %v1049 = vmul.f32 %v1033, %v1045
          %v1050 = vmul.f32 %v1034, %v1041
          %v1051 = vmul.f32 %v1035, %v1045
          %v1052 = vadd.f32 %v1048, %v1049
          %1053 = vadd.xlane.f32.xlu0 %v1052
          %v1054 = vpop.xlane.xlu0 %1053
          %v1055 = vadd.f32 %v1050, %v1051
          %1056 = vadd.xlane.f32.xlu0 %v1055
          %v1057 = vpop.xlane.xlu0 %1056
          %s1058 = sld [smem:[#allocation7]]
          %v1059 = vstv %s1058
          %v1060 = vadd.f32 %v1054, %v1059
          %v1061 = vadd.f32 %v1057, %v1059
          %v1062 = vunpack.c.l.bf16 %v620
          %v1063 = vunpack.c.l.bf16 %v621
          %v1064 = vmul.f32 %v1062, %v1060
          %v1065 = vmul.f32 %v1063, %v1061
          %v1066 = vpack.c.bf16 %v1065, %v1064
          %1067 = vst [vmem:[#allocation2] sm:$0xff] %v1066
        $region96: #{tpu_custom_call.1} parent=75 // pred_fallthru
          _
        %v1068 = vld [vmem:[%s614] sm:$0xff]
        %v1069 = vcvt.s32.f32 %v1068
        %1070 = vrot.lane.b32.xlu0 %v1068, 127
        %v1071 = vpop.permute.xlu0 %1070
        %s1072 = sadd.s32 %s49, %s50
        %s1073 = smul.u32 %s1072, 2
        %s1074 = sld [smem:[#allocation6 + %s1073]]
        %s1075 = sadd.s32 %s1073, 1
        %s1076 = sld [smem:[#allocation6 + %s1075]]
        %1077 = vst [vmem:[#allocation3] sm:$0xff] 0.0
        %1078 = vst [vmem:[#allocation3 + $0x8] sm:$0xff] 0.0
        %1079 = vst [vmem:[#allocation4] sm:$0xff] 0.0
        %p1080 = scmp.le.s32.totalorder 0, %s1076
        %s1081 = sadd.s32 0, 16
        %p1082 = scmp.gt.s32.totalorder %s1081, %s1074
        %p1083 = pnand %p1080, %p1082
        %p1084 = pneg %p1083
        // Predicated region
        $region97: #{tpu_custom_call.1} parent=75 // pred_check
          _
        $region98: #{tpu_custom_call.1} parent=75 // pred_check_branch
          %1086 = sbr.rel (%p1083) target = $region100
        $region99: #{tpu_custom_call.1} parent=75 // pred_region
          %v1087 = vlaneseq
          %v1088 = vand.u32 %v1087, 127
          %v1089 = vstv 0
          %v1090 = vadd.s32 %v1088, %v1089
          %1091 = vset.pattern.permute.xlu0 0
          %1092 = vperm.xlu0 %1091, %v1068
          %v1093 = vpop.permute.xlu0 %1092
          %1094 = vset.pattern.permute.xlu0 0
          %1095 = vperm.xlu0 %1094, %v1071
          %v1096 = vpop.permute.xlu0 %1095
          %vm1097 = vcmp.eq.s32.totalorder %v1090, %v1093
          %vm1098 = vcmp.eq.s32.totalorder %v1090, %v1096
          %v1099 = vsel %vm1097, 1, 0
          %v1100 = vsel %vm1098, 1, 0
          %v1101 = vcvt.s32.f32 %v1099
          %v1102 = vcvt.s32.f32 %v1100
          %v1103 = vpack.c.bf16 %v1102, %v1101
          %vm1104 = vcmp.ge.s32.totalorder %v1090, %v1093
          %1105 = vset.pattern.permute.xlu0 1
          %1106 = vperm.xlu0 %1105, %v1068
          %v1107 = vpop.permute.xlu0 %1106
          %vm1108 = vcmp.le.s32.totalorder %v1090, %v1107
          %vm1109 = vmand %vm1104, %vm1108
          %v1110 = vsel %vm1109, 1, 0
          %v1111 = vcvt.s32.f32 %v1110
          %v1112 = vpack.c.bf16 %v1111, %v1111
          %v1113 = vld [vmem:[%s607] sm:$0xf]
          %v1114 = vld [vmem:[%s607 + $0x4] sm:$0xf]
          %v1115 = vld [vmem:[#allocation3] sm:$0xff]
          %v1116 = vld [vmem:[#allocation3 + $0x8] sm:$0xff]
          %v1119 = vunpack.c.l.b16 %v1113
          %v1120 = vunpack.c.l.b16 %v1114
          %v1121 = vpack.c.b16 %v1120, %v1119
          %vm1123 = vcmask 130048
          %v1125 = vsel %vm1123, %v1103, 0
          %1127 = vmatprep.subr.bf16.mxu0 0
          %1128 = vmatpush1.bf16.msra.mxu0 %v1121
          %1129 = vmatprep.subr.bf16.mxu0 0
          %1130 = vmatpush1.bf16.msra.mxu0 0
          %1131 = vmatprep.subr.bf16.mxu0 0
          %1132 = vmatpush1.bf16.msra.mxu0 0
          %1133 = vmatprep.subr.bf16.mxu0 0
          %1134 = vmatpush1.bf16.msra.mxu0 0
          %1135 = vmatprep.subr.bf16.mxu0 0
          %1136 = vmatpush1.bf16.msra.mxu0 0
          %1137 = vmatprep.subr.bf16.mxu0 0
          %1138 = vmatpush1.bf16.msra.mxu0 0
          %1139 = vmatprep.subr.bf16.mxu0 0
          %1140 = vmatpush1.bf16.msra.mxu0 0
          %1141 = vmatprep.subr.bf16.mxu0 0
          %1142 = vmatpush1.bf16.msra.mxu0 0
          %1143 = vmatprep.subr.bf16.mxu0 0
          %1144 = vmatpush1.bf16.msra.mxu0 0
          %1145 = vmatprep.subr.bf16.mxu0 0
          %1146 = vmatpush1.bf16.msra.mxu0 0
          %1147 = vmatprep.subr.bf16.mxu0 0
          %1148 = vmatpush1.bf16.msra.mxu0 0
          %1149 = vmatprep.subr.bf16.mxu0 0
          %1150 = vmatpush1.bf16.msra.mxu0 0
          %1151 = vmatprep.subr.bf16.mxu0 0
          %1152 = vmatpush1.bf16.msra.mxu0 0
          %1153 = vmatprep.subr.bf16.mxu0 0
          %1154 = vmatpush1.bf16.msra.mxu0 0
          %1155 = vmatprep.subr.bf16.mxu0 0
          %1156 = vmatpush1.bf16.msra.mxu0 0
          %1157 = vmatprep.subr.bf16.mxu0 0
          %1158 = vmatpush1.bf16.msra.mxu0 0
          %1159 = vmatprep.mubr.bf16.mxu0 0
          %1160 = vmatmul.mubr.bf16.gmra.mrb[0].mxu0 %v1125
          %v1161 = vpop.f32.mrb[0].mxu0
          %v1162 = vadd.f32 0.0, %v1161
          %v1163 = vpop.f32.mrb[0].mxu0
          %v1164 = vpop.f32.mrb[0].mxu0
          %v1165 = vadd.f32 0.0, %v1164
          %v1166 = vpop.f32.mrb[0].mxu0
          %1167 = vdwg.mxu0
          %v1168 = vadd.f32 %v1115, %v1162
          %v1169 = vadd.f32 %v1116, %v1165
          %1170 = vst [vmem:[#allocation3] sm:$0xff] %v1168
          %1171 = vst [vmem:[#allocation3 + $0x8] sm:$0xff] %v1169
          %v1172 = vld [vmem:[#allocation4] sm:$0xff]
          %v1173 = vld [vmem:[#allocation2] sm:$0xff]
          %v1175 = vsel %vm1123, %v1112, 0
          %1177 = vmatprep.subr.bf16.mxu0 0
          %1178 = vmatpush1.bf16.msra.mxu0 %v1173
          %1179 = vmatprep.subr.bf16.mxu0 0
          %1180 = vmatpush1.bf16.msra.mxu0 0
          %1181 = vmatprep.subr.bf16.mxu0 0
          %1182 = vmatpush1.bf16.msra.mxu0 0
          %1183 = vmatprep.subr.bf16.mxu0 0
          %1184 = vmatpush1.bf16.msra.mxu0 0
          %1185 = vmatprep.subr.bf16.mxu0 0
          %1186 = vmatpush1.bf16.msra.mxu0 0
          %1187 = vmatprep.subr.bf16.mxu0 0
          %1188 = vmatpush1.bf16.msra.mxu0 0
          %1189 = vmatprep.subr.bf16.mxu0 0
          %1190 = vmatpush1.bf16.msra.mxu0 0
          %1191 = vmatprep.subr.bf16.mxu0 0
          %1192 = vmatpush1.bf16.msra.mxu0 0
          %1193 = vmatprep.subr.bf16.mxu0 0
          %1194 = vmatpush1.bf16.msra.mxu0 0
          %1195 = vmatprep.subr.bf16.mxu0 0
          %1196 = vmatpush1.bf16.msra.mxu0 0
          %1197 = vmatprep.subr.bf16.mxu0 0
          %1198 = vmatpush1.bf16.msra.mxu0 0
          %1199 = vmatprep.subr.bf16.mxu0 0
          %1200 = vmatpush1.bf16.msra.mxu0 0
          %1201 = vmatprep.subr.bf16.mxu0 0
          %1202 = vmatpush1.bf16.msra.mxu0 0
          %1203 = vmatprep.subr.bf16.mxu0 0
          %1204 = vmatpush1.bf16.msra.mxu0 0
          %1205 = vmatprep.subr.bf16.mxu0 0
          %1206 = vmatpush1.bf16.msra.mxu0 0
          %1207 = vmatprep.subr.bf16.mxu0 0
          %1208 = vmatpush1.bf16.msra.mxu0 0
          %1209 = vmatprep.mubr.bf16.mxu0 0
          %1210 = vmatmul.mubr.bf16.gmra.mrb[0].mxu0 %v1175
          %v1211 = vpop.f32.mrb[0].mxu0
          %v1212 = vadd.f32 0.0, %v1211
          %v1213 = vpop.f32.mrb[0].mxu0
          %v1214 = vpop.f32.mrb[0].mxu0
          %v1215 = vpop.f32.mrb[0].mxu0
          %1216 = vdwg.mxu0
          %v1217 = vadd.f32 %v1172, %v1212
          %1218 = vst [vmem:[#allocation4] sm:$0xff] %v1217
        $region100: #{tpu_custom_call.1} parent=75 // pred_fallthru
          _
        %v1219 = vld [vmem:[#allocation3] sm:$0xff]
        %1221 = vset.pattern.permute.xlu0 2
        %1222 = vperm.xlu0 %1221, %v1069
        %v1223 = vpop.permute.xlu0 %1222
        %v1225 = vmul.f32 %v1219, %v1223
        %v1226 = vld [vmem:[#allocation3 + $0x8] sm:$0xff]
        %v1227 = vmul.f32 %v1226, %v1223
        %v1228 = vld [vmem:[#allocation4] sm:$0xff]
        %v1229 = vmul.f32 %v1228, %v1223
        %1230 = vst [vmem:[%s596] sm:$0xff] %v1225
        %1231 = vst [vmem:[%s596 + $0x8] sm:$0xff] %v1227
        %1232 = vst [vmem:[%s596 + $0x10] sm:$0xff] %v1229
        %v1233 = vpack.c.bf16 %v1225, %v1225
        %v1234 = vld [vmem:[#allocation14] sm:$0xff]
        %v1235 = vld [vmem:[#allocation14 + $0x8] sm:$0xff]
        %v1236 = vld [vmem:[#allocation14 + $0x10] sm:$0xff]
        %v1237 = vld [vmem:[#allocation14 + $0x18] sm:$0xff]
        %v1238 = vld [vmem:[#allocation14 + $0x20] sm:$0xff]
        %v1239 = vld [vmem:[#allocation14 + $0x28] sm:$0xff]
        %v1240 = vld [vmem:[#allocation14 + $0x30] sm:$0xff]
        %v1241 = vld [vmem:[#allocation14 + $0x38] sm:$0xff]
        %v1242 = vld [vmem:[#allocation14 + $0x40] sm:$0xff]
        %v1243 = vld [vmem:[#allocation14 + $0x48] sm:$0xff]
        %v1244 = vld [vmem:[#allocation14 + $0x50] sm:$0xff]
        %v1245 = vld [vmem:[#allocation14 + $0x58] sm:$0xff]
        %v1246 = vld [vmem:[#allocation14 + $0x60] sm:$0xff]
        %v1247 = vld [vmem:[#allocation14 + $0x68] sm:$0xff]
        %v1248 = vld [vmem:[#allocation14 + $0x70] sm:$0xff]
        %v1249 = vld [vmem:[#allocation14 + $0x78] sm:$0xff]
        %v1250 = vpack.c.bf16 %v1227, %v1227
        %v1251 = vld [vmem:[#allocation14 + $0x80] sm:$0xff]
        %v1252 = vld [vmem:[#allocation14 + $0x88] sm:$0xff]
        %v1253 = vld [vmem:[#allocation14 + $0x90] sm:$0xff]
        %v1254 = vld [vmem:[#allocation14 + $0x98] sm:$0xff]
        %v1255 = vld [vmem:[#allocation14 + $0xa0] sm:$0xff]
        %v1256 = vld [vmem:[#allocation14 + $0xa8] sm:$0xff]
        %v1257 = vld [vmem:[#allocation14 + $0xb0] sm:$0xff]
        %v1258 = vld [vmem:[#allocation14 + $0xb8] sm:$0xff]
        %v1259 = vld [vmem:[#allocation14 + $0xc0] sm:$0xff]
        %v1260 = vld [vmem:[#allocation14 + $0xc8] sm:$0xff]
        %v1261 = vld [vmem:[#allocation14 + $0xd0] sm:$0xff]
        %v1262 = vld [vmem:[#allocation14 + $0xd8] sm:$0xff]
        %v1263 = vld [vmem:[#allocation14 + $0xe0] sm:$0xff]
        %v1264 = vld [vmem:[#allocation14 + $0xe8] sm:$0xff]
        %v1265 = vld [vmem:[#allocation14 + $0xf0] sm:$0xff]
        %v1266 = vld [vmem:[#allocation14 + $0xf8] sm:$0xff]
        %v1283 = vunpack.c.l.b16 %v1251
        %v1284 = vunpack.c.h.b16 %v1251
        %v1285 = vunpack.c.l.b16 %v1252
        %v1286 = vunpack.c.h.b16 %v1252
        %v1287 = vunpack.c.l.b16 %v1253
        %v1288 = vunpack.c.h.b16 %v1253
        %v1289 = vunpack.c.l.b16 %v1254
        %v1290 = vunpack.c.h.b16 %v1254
        %v1291 = vunpack.c.l.b16 %v1255
        %v1292 = vunpack.c.h.b16 %v1255
        %v1293 = vunpack.c.l.b16 %v1256
        %v1294 = vunpack.c.h.b16 %v1256
        %v1295 = vunpack.c.l.b16 %v1257
        %v1296 = vunpack.c.h.b16 %v1257
        %v1297 = vunpack.c.l.b16 %v1258
        %v1298 = vunpack.c.h.b16 %v1258
        %v1299 = vunpack.c.l.b16 %v1259
        %v1300 = vunpack.c.h.b16 %v1259
        %v1301 = vunpack.c.l.b16 %v1260
        %v1302 = vunpack.c.h.b16 %v1260
        %v1303 = vunpack.c.l.b16 %v1261
        %v1304 = vunpack.c.h.b16 %v1261
        %v1305 = vunpack.c.l.b16 %v1262
        %v1306 = vunpack.c.h.b16 %v1262
        %v1307 = vunpack.c.l.b16 %v1263
        %v1308 = vunpack.c.h.b16 %v1263
        %v1309 = vunpack.c.l.b16 %v1264
        %v1310 = vunpack.c.h.b16 %v1264
        %v1311 = vunpack.c.l.b16 %v1265
        %v1312 = vunpack.c.h.b16 %v1265
        %v1313 = vunpack.c.l.b16 %v1266
        %v1314 = vunpack.c.h.b16 %v1266
        %v1315 = vpack.c.b16 %v1285, %v1283
        %v1316 = vpack.c.b16 %v1286, %v1284
        %v1317 = vpack.c.b16 %v1289, %v1287
        %v1318 = vpack.c.b16 %v1290, %v1288
        %v1319 = vpack.c.b16 %v1293, %v1291
        %v1320 = vpack.c.b16 %v1294, %v1292
        %v1321 = vpack.c.b16 %v1297, %v1295
        %v1322 = vpack.c.b16 %v1298, %v1296
        %v1323 = vpack.c.b16 %v1301, %v1299
        %v1324 = vpack.c.b16 %v1302, %v1300
        %v1325 = vpack.c.b16 %v1305, %v1303
        %v1326 = vpack.c.b16 %v1306, %v1304
        %v1327 = vpack.c.b16 %v1309, %v1307
        %v1328 = vpack.c.b16 %v1310, %v1308
        %v1329 = vpack.c.b16 %v1313, %v1311
        %v1330 = vpack.c.b16 %v1314, %v1312
        %1347 = vmatprep.subr.bf16.mxu0 %v1316
        %1348 = vmatpush1.bf16.msra.mxu0 %v1315
        %1349 = vmatprep.subr.bf16.mxu0 %v1318
        %1350 = vmatpush1.bf16.msra.mxu0 %v1317
        %1351 = vmatprep.subr.bf16.mxu0 %v1320
        %1352 = vmatpush1.bf16.msra.mxu0 %v1319
        %1353 = vmatprep.subr.bf16.mxu0 %v1322
        %1354 = vmatpush1.bf16.msra.mxu0 %v1321
        %1355 = vmatprep.subr.bf16.mxu0 %v1324
        %1356 = vmatpush1.bf16.msra.mxu0 %v1323
        %1357 = vmatprep.subr.bf16.mxu0 %v1326
        %1358 = vmatpush1.bf16.msra.mxu0 %v1325
        %1359 = vmatprep.subr.bf16.mxu0 %v1328
        %1360 = vmatpush1.bf16.msra.mxu0 %v1327
        %1361 = vmatprep.subr.bf16.mxu0 %v1330
        %1362 = vmatpush1.bf16.msra.mxu0 %v1329
        %1363 = vmatprep.subr.bf16.mxu0 0
        %1364 = vmatpush1.bf16.msra.mxu0 0
        %1365 = vmatprep.subr.bf16.mxu0 0
        %1366 = vmatpush1.bf16.msra.mxu0 0
        %1367 = vmatprep.subr.bf16.mxu0 0
        %1368 = vmatpush1.bf16.msra.mxu0 0
        %1369 = vmatprep.subr.bf16.mxu0 0
        %1370 = vmatpush1.bf16.msra.mxu0 0
        %1371 = vmatprep.subr.bf16.mxu0 0
        %1372 = vmatpush1.bf16.msra.mxu0 0
        %1373 = vmatprep.subr.bf16.mxu0 0
        %1374 = vmatpush1.bf16.msra.mxu0 0
        %1375 = vmatprep.subr.bf16.mxu0 0
        %1376 = vmatpush1.bf16.msra.mxu0 0
        %1377 = vmatprep.subr.bf16.mxu0 0
        %1378 = vmatpush1.bf16.msra.mxu0 0
        %1379 = vmatprep.mubr.bf16.mxu0 0
        %1380 = vmatmul.mubr.bf16.gmra.mrb[0].mxu0 %v1250
        %v1381 = vpop.f32.mrb[0].mxu0
        %v1382 = vadd.f32 0.0, %v1381
        %v1383 = vpop.f32.mrb[0].mxu0
        %v1384 = vadd.f32 0.0, %v1383
        %v1385 = vpop.f32.mrb[0].mxu0
        %v1386 = vpop.f32.mrb[0].mxu0
        %1387 = vdwg.mxu0
        %v1404 = vunpack.c.l.b16 %v1234
        %v1405 = vunpack.c.h.b16 %v1234
        %v1406 = vunpack.c.l.b16 %v1235
        %v1407 = vunpack.c.h.b16 %v1235
        %v1408 = vunpack.c.l.b16 %v1236
        %v1409 = vunpack.c.h.b16 %v1236
        %v1410 = vunpack.c.l.b16 %v1237
        %v1411 = vunpack.c.h.b16 %v1237
        %v1412 = vunpack.c.l.b16 %v1238
        %v1413 = vunpack.c.h.b16 %v1238
        %v1414 = vunpack.c.l.b16 %v1239
        %v1415 = vunpack.c.h.b16 %v1239
        %v1416 = vunpack.c.l.b16 %v1240
        %v1417 = vunpack.c.h.b16 %v1240
        %v1418 = vunpack.c.l.b16 %v1241
        %v1419 = vunpack.c.h.b16 %v1241
        %v1420 = vunpack.c.l.b16 %v1242
        %v1421 = vunpack.c.h.b16 %v1242
        %v1422 = vunpack.c.l.b16 %v1243
        %v1423 = vunpack.c.h.b16 %v1243
        %v1424 = vunpack.c.l.b16 %v1244
        %v1425 = vunpack.c.h.b16 %v1244
        %v1426 = vunpack.c.l.b16 %v1245
        %v1427 = vunpack.c.h.b16 %v1245
        %v1428 = vunpack.c.l.b16 %v1246
        %v1429 = vunpack.c.h.b16 %v1246
        %v1430 = vunpack.c.l.b16 %v1247
        %v1431 = vunpack.c.h.b16 %v1247
        %v1432 = vunpack.c.l.b16 %v1248
        %v1433 = vunpack.c.h.b16 %v1248
        %v1434 = vunpack.c.l.b16 %v1249
        %v1435 = vunpack.c.h.b16 %v1249
        %v1436 = vpack.c.b16 %v1406, %v1404
        %v1437 = vpack.c.b16 %v1407, %v1405
        %v1438 = vpack.c.b16 %v1410, %v1408
        %v1439 = vpack.c.b16 %v1411, %v1409
        %v1440 = vpack.c.b16 %v1414, %v1412
        %v1441 = vpack.c.b16 %v1415, %v1413
        %v1442 = vpack.c.b16 %v1418, %v1416
        %v1443 = vpack.c.b16 %v1419, %v1417
        %v1444 = vpack.c.b16 %v1422, %v1420
        %v1445 = vpack.c.b16 %v1423, %v1421
        %v1446 = vpack.c.b16 %v1426, %v1424
        %v1447 = vpack.c.b16 %v1427, %v1425
        %v1448 = vpack.c.b16 %v1430, %v1428
        %v1449 = vpack.c.b16 %v1431, %v1429
        %v1450 = vpack.c.b16 %v1434, %v1432
        %v1451 = vpack.c.b16 %v1435, %v1433
        %1468 = vmatprep.subr.bf16.mxu0 %v1437
        %1469 = vmatpush1.bf16.msra.mxu0 %v1436
        %1470 = vmatprep.subr.bf16.mxu0 %v1439
        %1471 = vmatpush1.bf16.msra.mxu0 %v1438
        %1472 = vmatprep.subr.bf16.mxu0 %v1441
        %1473 = vmatpush1.bf16.msra.mxu0 %v1440
        %1474 = vmatprep.subr.bf16.mxu0 %v1443
        %1475 = vmatpush1.bf16.msra.mxu0 %v1442
        %1476 = vmatprep.subr.bf16.mxu0 %v1445
        %1477 = vmatpush1.bf16.msra.mxu0 %v1444
        %1478 = vmatprep.subr.bf16.mxu0 %v1447
        %1479 = vmatpush1.bf16.msra.mxu0 %v1446
        %1480 = vmatprep.subr.bf16.mxu0 %v1449
        %1481 = vmatpush1.bf16.msra.mxu0 %v1448
        %1482 = vmatprep.subr.bf16.mxu0 %v1451
        %1483 = vmatpush1.bf16.msra.mxu0 %v1450
        %1484 = vmatprep.subr.bf16.mxu0 0
        %1485 = vmatpush1.bf16.msra.mxu0 0
        %1486 = vmatprep.subr.bf16.mxu0 0
        %1487 = vmatpush1.bf16.msra.mxu0 0
        %1488 = vmatprep.subr.bf16.mxu0 0
        %1489 = vmatpush1.bf16.msra.mxu0 0
        %1490 = vmatprep.subr.bf16.mxu0 0
        %1491 = vmatpush1.bf16.msra.mxu0 0
        %1492 = vmatprep.subr.bf16.mxu0 0
        %1493 = vmatpush1.bf16.msra.mxu0 0
        %1494 = vmatprep.subr.bf16.mxu0 0
        %1495 = vmatpush1.bf16.msra.mxu0 0
        %1496 = vmatprep.subr.bf16.mxu0 0
        %1497 = vmatpush1.bf16.msra.mxu0 0
        %1498 = vmatprep.subr.bf16.mxu0 0
        %1499 = vmatpush1.bf16.msra.mxu0 0
        %1500 = vmatprep.mubr.bf16.mxu0 0
        %1501 = vmatmul.mubr.bf16.gmra.mrb[0].mxu0 %v1233
        %v1502 = vpop.f32.mrb[0].mxu0
        %v1503 = vadd.f32 %v1382, %v1502
        %v1504 = vpop.f32.mrb[0].mxu0
        %v1505 = vadd.f32 %v1384, %v1504
        %v1506 = vpop.f32.mrb[0].mxu0
        %v1507 = vpop.f32.mrb[0].mxu0
        %1508 = vdwg.mxu0
        %v1509 = vpack.c.bf16 %v1229, %v1229
        %v1510 = vld [vmem:[#allocation14 + $0x100] sm:$0xff]
        %v1511 = vld [vmem:[#allocation14 + $0x108] sm:$0xff]
        %v1512 = vld [vmem:[#allocation14 + $0x110] sm:$0xff]
        %v1513 = vld [vmem:[#allocation14 + $0x118] sm:$0xff]
        %v1514 = vld [vmem:[#allocation14 + $0x120] sm:$0xff]
        %v1515 = vld [vmem:[#allocation14 + $0x128] sm:$0xff]
        %v1516 = vld [vmem:[#allocation14 + $0x130] sm:$0xff]
        %v1517 = vld [vmem:[#allocation14 + $0x138] sm:$0xff]
        %v1518 = vld [vmem:[#allocation14 + $0x140] sm:$0xff]
        %v1519 = vld [vmem:[#allocation14 + $0x148] sm:$0xff]
        %v1520 = vld [vmem:[#allocation14 + $0x150] sm:$0xff]
        %v1521 = vld [vmem:[#allocation14 + $0x158] sm:$0xff]
        %v1522 = vld [vmem:[#allocation14 + $0x160] sm:$0xff]
        %v1523 = vld [vmem:[#allocation14 + $0x168] sm:$0xff]
        %v1524 = vld [vmem:[#allocation14 + $0x170] sm:$0xff]
        %v1525 = vld [vmem:[#allocation14 + $0x178] sm:$0xff]
        %v1542 = vunpack.c.l.b16 %v1510
        %v1543 = vunpack.c.h.b16 %v1510
        %v1544 = vunpack.c.l.b16 %v1511
        %v1545 = vunpack.c.h.b16 %v1511
        %v1546 = vunpack.c.l.b16 %v1512
        %v1547 = vunpack.c.h.b16 %v1512
        %v1548 = vunpack.c.l.b16 %v1513
        %v1549 = vunpack.c.h.b16 %v1513
        %v1550 = vunpack.c.l.b16 %v1514
        %v1551 = vunpack.c.h.b16 %v1514
        %v1552 = vunpack.c.l.b16 %v1515
        %v1553 = vunpack.c.h.b16 %v1515
        %v1554 = vunpack.c.l.b16 %v1516
        %v1555 = vunpack.c.h.b16 %v1516
        %v1556 = vunpack.c.l.b16 %v1517
        %v1557 = vunpack.c.h.b16 %v1517
        %v1558 = vunpack.c.l.b16 %v1518
        %v1559 = vunpack.c.h.b16 %v1518
        %v1560 = vunpack.c.l.b16 %v1519
        %v1561 = vunpack.c.h.b16 %v1519
        %v1562 = vunpack.c.l.b16 %v1520
        %v1563 = vunpack.c.h.b16 %v1520
        %v1564 = vunpack.c.l.b16 %v1521
        %v1565 = vunpack.c.h.b16 %v1521
        %v1566 = vunpack.c.l.b16 %v1522
        %v1567 = vunpack.c.h.b16 %v1522
        %v1568 = vunpack.c.l.b16 %v1523
        %v1569 = vunpack.c.h.b16 %v1523
        %v1570 = vunpack.c.l.b16 %v1524
        %v1571 = vunpack.c.h.b16 %v1524
        %v1572 = vunpack.c.l.b16 %v1525
        %v1573 = vunpack.c.h.b16 %v1525
        %v1574 = vpack.c.b16 %v1544, %v1542
        %v1575 = vpack.c.b16 %v1545, %v1543
        %v1576 = vpack.c.b16 %v1548, %v1546
        %v1577 = vpack.c.b16 %v1549, %v1547
        %v1578 = vpack.c.b16 %v1552, %v1550
        %v1579 = vpack.c.b16 %v1553, %v1551
        %v1580 = vpack.c.b16 %v1556, %v1554
        %v1581 = vpack.c.b16 %v1557, %v1555
        %v1582 = vpack.c.b16 %v1560, %v1558
        %v1583 = vpack.c.b16 %v1561, %v1559
        %v1584 = vpack.c.b16 %v1564, %v1562
        %v1585 = vpack.c.b16 %v1565, %v1563
        %v1586 = vpack.c.b16 %v1568, %v1566
        %v1587 = vpack.c.b16 %v1569, %v1567
        %v1588 = vpack.c.b16 %v1572, %v1570
        %v1589 = vpack.c.b16 %v1573, %v1571
        %1606 = vmatprep.subr.bf16.mxu0 %v1575
        %1607 = vmatpush1.bf16.msra.mxu0 %v1574
        %1608 = vmatprep.subr.bf16.mxu0 %v1577
        %1609 = vmatpush1.bf16.msra.mxu0 %v1576
        %1610 = vmatprep.subr.bf16.mxu0 %v1579
        %1611 = vmatpush1.bf16.msra.mxu0 %v1578
        %1612 = vmatprep.subr.bf16.mxu0 %v1581
        %1613 = vmatpush1.bf16.msra.mxu0 %v1580
        %1614 = vmatprep.subr.bf16.mxu0 %v1583
        %1615 = vmatpush1.bf16.msra.mxu0 %v1582
        %1616 = vmatprep.subr.bf16.mxu0 %v1585
        %1617 = vmatpush1.bf16.msra.mxu0 %v1584
        %1618 = vmatprep.subr.bf16.mxu0 %v1587
        %1619 = vmatpush1.bf16.msra.mxu0 %v1586
        %1620 = vmatprep.subr.bf16.mxu0 %v1589
        %1621 = vmatpush1.bf16.msra.mxu0 %v1588
        %1622 = vmatprep.subr.bf16.mxu0 0
        %1623 = vmatpush1.bf16.msra.mxu0 0
        %1624 = vmatprep.subr.bf16.mxu0 0
        %1625 = vmatpush1.bf16.msra.mxu0 0
        %1626 = vmatprep.subr.bf16.mxu0 0
        %1627 = vmatpush1.bf16.msra.mxu0 0
        %1628 = vmatprep.subr.bf16.mxu0 0
        %1629 = vmatpush1.bf16.msra.mxu0 0
        %1630 = vmatprep.subr.bf16.mxu0 0
        %1631 = vmatpush1.bf16.msra.mxu0 0
        %1632 = vmatprep.subr.bf16.mxu0 0
        %1633 = vmatpush1.bf16.msra.mxu0 0
        %1634 = vmatprep.subr.bf16.mxu0 0
        %1635 = vmatpush1.bf16.msra.mxu0 0
        %1636 = vmatprep.subr.bf16.mxu0 0
        %1637 = vmatpush1.bf16.msra.mxu0 0
        %1638 = vmatprep.mubr.bf16.mxu0 0
        %1639 = vmatmul.mubr.bf16.gmra.mrb[0].mxu0 %v1509
        %v1640 = vpop.f32.mrb[0].mxu0
        %v1641 = vadd.f32 0.0, %v1640
        %v1642 = vpop.f32.mrb[0].mxu0
        %v1643 = vadd.f32 0.0, %v1642
        %v1644 = vpop.f32.mrb[0].mxu0
        %v1645 = vpop.f32.mrb[0].mxu0
        %1646 = vdwg.mxu0
        %v1647 = vadd.f32 %v1503, %v1641
        %v1648 = vadd.f32 %v1505, %v1643
        %v1649 = vld [vmem:[%s9] sm:$0x3]
        %v1651 = vlaneseq
        %v1652 = vshrl.u32 %v1651, 7
        %v1653 = vsub.s32 0, %v1652
        %v1654 = vrot.slane %v1649, %v1653
        %v1655 = vlaneseq
        %v1656 = vshrl.u32 %v1655, 7
        %v1657 = vsub.s32 1, %v1656
        %v1658 = vrot.slane %v1649, %v1657
        %v1661 = vadd.f32 %v1647, %v1654
        %v1662 = vadd.f32 %v1648, %v1658
        %v1663 = vmax.f32 %v1661, 0.0
        %v1664 = vmax.f32 %v1662, 0.0
        %v1665 = vpack.c.bf16 %v1663, %v1663
        %v1666 = vpack.c.bf16 %v1664, %v1664
        %v1667 = vld [vmem:[#allocation15] sm:$0xff]
        %v1668 = vld [vmem:[#allocation15 + $0x8] sm:$0xff]
        %v1669 = vld [vmem:[#allocation15 + $0x10] sm:$0xff]
        %v1670 = vld [vmem:[#allocation15 + $0x18] sm:$0xff]
        %v1671 = vld [vmem:[#allocation15 + $0x20] sm:$0xff]
        %v1672 = vld [vmem:[#allocation15 + $0x28] sm:$0xff]
        %v1673 = vld [vmem:[#allocation15 + $0x30] sm:$0xff]
        %v1674 = vld [vmem:[#allocation15 + $0x38] sm:$0xff]
        %v1675 = vld [vmem:[#allocation15 + $0x40] sm:$0xff]
        %v1676 = vld [vmem:[#allocation15 + $0x48] sm:$0xff]
        %v1677 = vld [vmem:[#allocation15 + $0x50] sm:$0xff]
        %v1678 = vld [vmem:[#allocation15 + $0x58] sm:$0xff]
        %v1679 = vld [vmem:[#allocation15 + $0x60] sm:$0xff]
        %v1680 = vld [vmem:[#allocation15 + $0x68] sm:$0xff]
        %v1681 = vld [vmem:[#allocation15 + $0x70] sm:$0xff]
        %v1682 = vld [vmem:[#allocation15 + $0x78] sm:$0xff]
        %v1683 = vld [vmem:[#allocation15 + $0x80] sm:$0xff]
        %v1684 = vld [vmem:[#allocation15 + $0x88] sm:$0xff]
        %v1685 = vld [vmem:[#allocation15 + $0x90] sm:$0xff]
        %v1686 = vld [vmem:[#allocation15 + $0x98] sm:$0xff]
        %v1687 = vld [vmem:[#allocation15 + $0xa0] sm:$0xff]
        %v1688 = vld [vmem:[#allocation15 + $0xa8] sm:$0xff]
        %v1689 = vld [vmem:[#allocation15 + $0xb0] sm:$0xff]
        %v1690 = vld [vmem:[#allocation15 + $0xb8] sm:$0xff]
        %v1691 = vld [vmem:[#allocation15 + $0xc0] sm:$0xff]
        %v1692 = vld [vmem:[#allocation15 + $0xc8] sm:$0xff]
        %v1693 = vld [vmem:[#allocation15 + $0xd0] sm:$0xff]
        %v1694 = vld [vmem:[#allocation15 + $0xd8] sm:$0xff]
        %v1695 = vld [vmem:[#allocation15 + $0xe0] sm:$0xff]
        %v1696 = vld [vmem:[#allocation15 + $0xe8] sm:$0xff]
        %v1697 = vld [vmem:[#allocation15 + $0xf0] sm:$0xff]
        %v1698 = vld [vmem:[#allocation15 + $0xf8] sm:$0xff]
        %v1699 = vld [vmem:[%s11] sm:$0x3]
        %v1701 = vlaneseq
        %v1702 = vshrl.u32 %v1701, 7
        %v1703 = vsub.s32 0, %v1702
        %v1704 = vrot.slane %v1699, %v1703
        %v1705 = vlaneseq
        %v1706 = vshrl.u32 %v1705, 7
        %v1707 = vsub.s32 1, %v1706
        %v1708 = vrot.slane %v1699, %v1707
        %v1743 = vunpack.c.l.b16 %v1667
        %v1744 = vunpack.c.h.b16 %v1667
        %v1745 = vunpack.c.l.b16 %v1668
        %v1746 = vunpack.c.h.b16 %v1668
        %v1747 = vunpack.c.l.b16 %v1669
        %v1748 = vunpack.c.h.b16 %v1669
        %v1749 = vunpack.c.l.b16 %v1670
        %v1750 = vunpack.c.h.b16 %v1670
        %v1751 = vunpack.c.l.b16 %v1671
        %v1752 = vunpack.c.h.b16 %v1671
        %v1753 = vunpack.c.l.b16 %v1672
        %v1754 = vunpack.c.h.b16 %v1672
        %v1755 = vunpack.c.l.b16 %v1673
        %v1756 = vunpack.c.h.b16 %v1673
        %v1757 = vunpack.c.l.b16 %v1674
        %v1758 = vunpack.c.h.b16 %v1674
        %v1759 = vunpack.c.l.b16 %v1675
        %v1760 = vunpack.c.h.b16 %v1675
        %v1761 = vunpack.c.l.b16 %v1676
        %v1762 = vunpack.c.h.b16 %v1676
        %v1763 = vunpack.c.l.b16 %v1677
        %v1764 = vunpack.c.h.b16 %v1677
        %v1765 = vunpack.c.l.b16 %v1678
        %v1766 = vunpack.c.h.b16 %v1678
        %v1767 = vunpack.c.l.b16 %v1679
        %v1768 = vunpack.c.h.b16 %v1679
        %v1769 = vunpack.c.l.b16 %v1680
        %v1770 = vunpack.c.h.b16 %v1680
        %v1771 = vunpack.c.l.b16 %v1681
        %v1772 = vunpack.c.h.b16 %v1681
        %v1773 = vunpack.c.l.b16 %v1682
        %v1774 = vunpack.c.h.b16 %v1682
        %v1775 = vunpack.c.l.b16 %v1683
        %v1776 = vunpack.c.h.b16 %v1683
        %v1777 = vunpack.c.l.b16 %v1684
        %v1778 = vunpack.c.h.b16 %v1684
        %v1779 = vunpack.c.l.b16 %v1685
        %v1780 = vunpack.c.h.b16 %v1685
        %v1781 = vunpack.c.l.b16 %v1686
        %v1782 = vunpack.c.h.b16 %v1686
        %v1783 = vunpack.c.l.b16 %v1687
        %v1784 = vunpack.c.h.b16 %v1687
        %v1785 = vunpack.c.l.b16 %v1688
        %v1786 = vunpack.c.h.b16 %v1688
        %v1787 = vunpack.c.l.b16 %v1689
        %v1788 = vunpack.c.h.b16 %v1689
        %v1789 = vunpack.c.l.b16 %v1690
        %v1790 = vunpack.c.h.b16 %v1690
        %v1791 = vunpack.c.l.b16 %v1691
        %v1792 = vunpack.c.h.b16 %v1691
        %v1793 = vunpack.c.l.b16 %v1692
        %v1794 = vunpack.c.h.b16 %v1692
        %v1795 = vunpack.c.l.b16 %v1693
        %v1796 = vunpack.c.h.b16 %v1693
        %v1797 = vunpack.c.l.b16 %v1694
        %v1798 = vunpack.c.h.b16 %v1694
        %v1799 = vunpack.c.l.b16 %v1695
        %v1800 = vunpack.c.h.b16 %v1695
        %v1801 = vunpack.c.l.b16 %v1696
        %v1802 = vunpack.c.h.b16 %v1696
        %v1803 = vunpack.c.l.b16 %v1697
        %v1804 = vunpack.c.h.b16 %v1697
        %v1805 = vunpack.c.l.b16 %v1698
        %v1806 = vunpack.c.h.b16 %v1698
        %v1807 = vpack.c.b16 %v1745, %v1743
        %v1808 = vpack.c.b16 %v1746, %v1744
        %v1809 = vpack.c.b16 %v1749, %v1747
        %v1810 = vpack.c.b16 %v1750, %v1748
        %v1811 = vpack.c.b16 %v1753, %v1751
        %v1812 = vpack.c.b16 %v1754, %v1752
        %v1813 = vpack.c.b16 %v1757, %v1755
        %v1814 = vpack.c.b16 %v1758, %v1756
        %v1815 = vpack.c.b16 %v1761, %v1759
        %v1816 = vpack.c.b16 %v1762, %v1760
        %v1817 = vpack.c.b16 %v1765, %v1763
        %v1818 = vpack.c.b16 %v1766, %v1764
        %v1819 = vpack.c.b16 %v1769, %v1767
        %v1820 = vpack.c.b16 %v1770, %v1768
        %v1821 = vpack.c.b16 %v1773, %v1771
        %v1822 = vpack.c.b16 %v1774, %v1772
        %v1823 = vpack.c.b16 %v1777, %v1775
        %v1824 = vpack.c.b16 %v1778, %v1776
        %v1825 = vpack.c.b16 %v1781, %v1779
        %v1826 = vpack.c.b16 %v1782, %v1780
        %v1827 = vpack.c.b16 %v1785, %v1783
        %v1828 = vpack.c.b16 %v1786, %v1784
        %v1829 = vpack.c.b16 %v1789, %v1787
        %v1830 = vpack.c.b16 %v1790, %v1788
        %v1831 = vpack.c.b16 %v1793, %v1791
        %v1832 = vpack.c.b16 %v1794, %v1792
        %v1833 = vpack.c.b16 %v1797, %v1795
        %v1834 = vpack.c.b16 %v1798, %v1796
        %v1835 = vpack.c.b16 %v1801, %v1799
        %v1836 = vpack.c.b16 %v1802, %v1800
        %v1837 = vpack.c.b16 %v1805, %v1803
        %v1838 = vpack.c.b16 %v1806, %v1804
        %1871 = vmatprep.subr.bf16.mxu0 %v1808
        %1872 = vmatpush1.bf16.msra.mxu0 %v1807
        %1873 = vmatprep.subr.bf16.mxu0 %v1810
        %1874 = vmatpush1.bf16.msra.mxu0 %v1809
        %1875 = vmatprep.subr.bf16.mxu0 %v1812
        %1876 = vmatpush1.bf16.msra.mxu0 %v1811
        %1877 = vmatprep.subr.bf16.mxu0 %v1814
        %1878 = vmatpush1.bf16.msra.mxu0 %v1813
        %1879 = vmatprep.subr.bf16.mxu0 %v1816
        %1880 = vmatpush1.bf16.msra.mxu0 %v1815
        %1881 = vmatprep.subr.bf16.mxu0 %v1818
        %1882 = vmatpush1.bf16.msra.mxu0 %v1817
        %1883 = vmatprep.subr.bf16.mxu0 %v1820
        %1884 = vmatpush1.bf16.msra.mxu0 %v1819
        %1885 = vmatprep.subr.bf16.mxu0 %v1822
        %1886 = vmatpush1.bf16.msra.mxu0 %v1821
        %1887 = vmatprep.subr.bf16.mxu0 %v1824
        %1888 = vmatpush1.bf16.msra.mxu0 %v1823
        %1889 = vmatprep.subr.bf16.mxu0 %v1826
        %1890 = vmatpush1.bf16.msra.mxu0 %v1825
        %1891 = vmatprep.subr.bf16.mxu0 %v1828
        %1892 = vmatpush1.bf16.msra.mxu0 %v1827
        %1893 = vmatprep.subr.bf16.mxu0 %v1830
        %1894 = vmatpush1.bf16.msra.mxu0 %v1829
        %1895 = vmatprep.subr.bf16.mxu0 %v1832
        %1896 = vmatpush1.bf16.msra.mxu0 %v1831
        %1897 = vmatprep.subr.bf16.mxu0 %v1834
        %1898 = vmatpush1.bf16.msra.mxu0 %v1833
        %1899 = vmatprep.subr.bf16.mxu0 %v1836
        %1900 = vmatpush1.bf16.msra.mxu0 %v1835
        %1901 = vmatprep.subr.bf16.mxu0 %v1838
        %1902 = vmatpush1.bf16.msra.mxu0 %v1837
        %1903 = vmatprep.mubr.bf16.mxu0 %v1666
        %1904 = vmatmul.mubr.bf16.gmra.mrb[0].mxu0 %v1665
        %v1905 = vpop.f32.mrb[0].mxu0
        %v1906 = vadd.f32 %v1704, %v1905
        %v1907 = vpop.f32.mrb[0].mxu0
        %v1908 = vadd.f32 %v1708, %v1907
        %v1909 = vpop.f32.mrb[0].mxu0
        %v1910 = vpop.f32.mrb[0].mxu0
        %1911 = vdwg.mxu0
        %v1912 = vmax.f32 %v1906, 0.0
        %v1913 = vmax.f32 %v1908, 0.0
        %v1914 = vld [vmem:[%s12] sm:$0x3]
        %v1916 = vlaneseq
        %v1917 = vshrl.u32 %v1916, 7
        %v1918 = vsub.s32 0, %v1917
        %v1919 = vrot.slane %v1914, %v1918
        %v1920 = vlaneseq
        %v1921 = vshrl.u32 %v1920, 7
        %v1922 = vsub.s32 1, %v1921
        %v1923 = vrot.slane %v1914, %v1922
        %v1926 = vmul.f32 %v1912, %v1919
        %v1927 = vmul.f32 %v1913, %v1923
        %v1928 = vadd.f32 %v1926, %v1927
        %1929 = vadd.xlane.f32.xlu0 %v1928
        %v1930 = vpop.xlane.xlu0 %1929
        %s1931 = sld [smem:[#allocation8]]
        %v1932 = vstv %s1931
        %v1933 = vadd.f32 %v1930, %v1932
        %v1935 = vlaneseq
        %v1936 = vand.u32 %v1935, 127
        %v1937 = vlaneseq
        %v1938 = vshrl.u32 %v1937, 7
        %v1939 = vsub.s32 %v1936, %v1938
        %v1940 = vrot.slane %v1933, %v1939
        %vm1942 = vcmask 57344
        %1943 = vst.msk [vmem:[%s602] sm:$0x1] %vm1942, %v1940
        %s1944 = sand.u32 %s373, 1
        %s1945 = scalar_lea.sflag [#allocation11], %s1944
        %s1946 = sand.u32 %s373, 1
        %s1947 = smul.addr %s1946, 24
        %s1948 = scalar_lea.vmem [#allocation17], %s1947
        %s1949 = sand.u32 %s401, 1
        %s1950 = scalar_lea.sflag [#allocation19], %s1949
        %s1951 = sand.u32 %s401, 1
        %s1952 = scalar_lea.vmem [#allocation18], %s1951
        // Predicated region
        $region101: #{tpu_custom_call.1} parent=75 // pred_check
          %p1953 = pneg %p383
        $region102: #{tpu_custom_call.1} parent=75 // pred_check_branch
          %1955 = sbr.rel (%p1953) target = $region104
        $region103: #{tpu_custom_call.1} parent=75 // pred_region
          %s1957 = ssub.s32 384, 384
          %1958 = vsyncadd %s1945, %s1957
          %s1959 = smul.addr %s50, 3
          %s1960 = smul.addr %s49, 3
          %s1961 = sadd.s32 %s1959, %s1960
          %s1962 = smul.addr %s1961, 128
          %s1963 = scalar_lea.hbm %s15, %s1962
          %s1965 = sshll.u32 %s1948, 4
          %s1966 = int_to_ptr.vmem [resolvable:$true] %s1965
          %1968 = dma.vmem_to_hbm [thread:$0]  %s1966, 384, %s1963, %s1945
        $region104: #{tpu_custom_call.1} parent=75 // pred_fallthru
          _
        // Predicated region
        $region105: #{tpu_custom_call.1} parent=75 // pred_check
          %p1969 = pneg %p411
        $region106: #{tpu_custom_call.1} parent=75 // pred_check_branch
          %1971 = sbr.rel (%p1969) target = $region108
        $region107: #{tpu_custom_call.1} parent=75 // pred_region
          %s1973 = ssub.s32 16, 16
          %1974 = vsyncadd %s1950, %s1973
          %s1975 = sadd.s32 %s50, %s49
          %s1976 = smul.addr %s1975, 16
          %s1977 = scalar_lea.hbm %s16, %s1976
          %s1979 = sshll.u32 %s1952, 4
          %s1980 = int_to_ptr.vmem [resolvable:$true] %s1979
          %1982 = dma.vmem_to_hbm [thread:$0]  %s1980, 16, %s1977, %s1950
        $region108: #{tpu_custom_call.1} parent=75 // pred_fallthru
          _
      $region76: #{tpu_custom_call.1} parent=5 // pred_fallthru
        _
      %p1983 = scmp.le.s32.totalorder 2, %s40
      // Predicated region
      $region109: #{tpu_custom_call.1} parent=5 // pred_check
        %p1984 = pneg %p1983
      $region110: #{tpu_custom_call.1} parent=5 // pred_check_branch
        %1986 = sbr.rel (%p1984) target = $region112
      $region111: #{tpu_custom_call.1} parent=5 // pred_region
        %s1987 = ssub.s32 %s40, 2
        // Predicated region
        $region113: #{tpu_custom_call.1} parent=111 // pred_check
          %p1988 = pneg %p389
        $region114: #{tpu_custom_call.1} parent=111 // pred_check_branch
          %1990 = sbr.rel (%p1988) target = $region116
        $region115: #{tpu_custom_call.1} parent=111 // pred_region
          %s1991 = sand.u32 %s374, 1
          %s1992 = scalar_lea.sflag [#allocation11], %s1991
          %s1993 = sand.u32 %s374, 1
          %s1994 = smul.addr %s1993, 24
          %s1995 = scalar_lea.vmem [#allocation17], %s1994
          %1996 = dma.done %s1992, 384
        $region116: #{tpu_custom_call.1} parent=111 // pred_fallthru
          _
        // Predicated region
        $region117: #{tpu_custom_call.1} parent=111 // pred_check
          %p1997 = pneg %p417
        $region118: #{tpu_custom_call.1} parent=111 // pred_check_branch
          %1999 = sbr.rel (%p1997) target = $region120
        $region119: #{tpu_custom_call.1} parent=111 // pred_region
          %s2000 = sand.u32 %s402, 1
          %s2001 = scalar_lea.sflag [#allocation19], %s2000
          %s2002 = sand.u32 %s402, 1
          %s2003 = scalar_lea.vmem [#allocation18], %s2002
          %2004 = dma.done %s2001, 16
        $region120: #{tpu_custom_call.1} parent=111 // pred_fallthru
          _
      $region112: #{tpu_custom_call.1} parent=5 // pred_fallthru
        _
    $region6: #{tpu_custom_call.1} parent=1 // loop_footer
      %s44 = sadd.s32 1, %s40
    $region7: #{tpu_custom_call.1} parent=1 // loop_footer_branch
      %39 = sbr.rel target = $region3
    $region8: #{tpu_custom_call.1} parent=1 // loop_exit
      _
    %2005 = vsyncpa [#allocation10], 1
    %s2006 = scalar_lea.sflag [#allocation10], 1
    %2007 = vsyncpa %s2006, 1
    %2008 = vsyncpa [#allocation13], 1
    %2009 = vsyncpa [#allocation16], 1
    %2010 = vsyncpa [#allocation11], 1
    %s2011 = scalar_lea.sflag [#allocation11], 1
    %2012 = vsyncpa %s2011, 1
    %2013 = vsyncpa [#allocation19], 1
    %s2014 = scalar_lea.sflag [#allocation19], 1
    %2015 = vsyncpa %s2014, 1

</llo_original>
